<compile_context>
chip_gen: v5e
topology: v5e:2x2
jax: 0.10.0
libtpu: 0.0.40
codegen_flags: <defaults>
</compile_context>

<pallas_src>
import jax
import jax.numpy as jnp
from jax.experimental import pallas as pl
from jax.experimental.pallas import tpu as pltpu

_LANES = 128


def _ceil_to(x, m):
    return -(-x // m) * m


def _vmem_capacity_bytes():
    try:
        return int(pltpu.get_tpu_info().vmem_capacity_bytes)
    except Exception:
        return 64 * 1024 * 1024  # conservative fallback: v7x per-TensorCore VMEM


def _padded_bytes(shape, itemsize):
    """VMEM footprint estimate with (8, 128) tile padding on the last two dims."""
    s = list(shape)
    s[-1] = _ceil_to(s[-1], _LANES)
    if len(s) >= 2:
        s[-2] = _ceil_to(s[-2], 8)
    n = 1
    for d in s:
        n *= d
    return n * itemsize


def _pick_block_h(H, W, Cin, C_pad, Cout_pad, K, p, budget_bytes):
    """Pick an H-tile whose per-step working set fits the VMEM budget, preferring
    the smallest tile that still gives >=1024 rows per matmul (MXU efficiency)."""
    Wp = W + 2 * p
    KKCp = K * K * C_pad
    step = 2 * p
    cands = [d for d in range(step, H + 1, step) if H % d == 0]
    if not cands:
        raise NotImplementedError(
            "H must be divisible by 2*(kernel_size//2) for the halo tiling")

    def footprint(th):
        b = 0
        b += 2 * _padded_bytes((th, Wp, Cin), 2)         # main input block (x2 buffers)
        b += 2 * _padded_bytes((2 * p, Wp, Cin), 2)      # halo input block (x2 buffers)
        b += 2 * _padded_bytes((KKCp, Cout_pad), 2)      # weights (x2 buffers)
        b += 2 * _padded_bytes((th, W, Cout_pad), 2)     # bf16 output block (x2 buffers)
        b += _padded_bytes((th + 2 * p, Wp, C_pad), 2)   # lane-padded slab scratch
        b += _padded_bytes((th, W, KKCp), 2)             # im2col lhs temporary
        b += _padded_bytes((th, W, Cout_pad), 4)         # f32 accumulator
        return int(b * 1.15) + (1 << 20)                 # fudge for spills/internal

    fitting = [th for th in cands if footprint(th) <= budget_bytes]
    if not fitting:
        return cands[0]
    for th in fitting:                                   # smallest TH with enough MXU rows
        if th * W >= 1024:
            return th
    return fitting[-1]                                   # else largest that fits


def conv_forward(x_nchw, weight_oikk, bias, kernel_size, block_h=None):
    """Conv2d, stride=1, padding=kernel_size//2, bias=True (PyTorch semantics)."""
    N, Cin, H, W = x_nchw.shape
    Cout = weight_oikk.shape[0]
    K = int(kernel_size)
    if K % 2 != 1 or K < 3:
        # TODO(synk): even K gives an (H+1, W+1) PyTorch output and K == 1 needs
        #             no halo (plain matmul); neither path is implemented here.
        raise NotImplementedError("only odd kernel_size >= 3 is supported")
    p = K // 2
    Wp = W + 2 * p
    C_pad = _ceil_to(Cin, _LANES)        # per-tap lane-padded channel count
    Cout_pad = _ceil_to(Cout, _LANES)    # lane-dense output channels
    KKCp = K * K * C_pad

    cap = _vmem_capacity_bytes()
    vmem_limit = max(32 * 1024 * 1024, min(3 * cap // 4, 100 * 1024 * 1024))
    budget = 2 * cap // 5
    TH = block_h if block_h is not None else _pick_block_h(
        H, W, Cin, C_pad, Cout_pad, K, p, budget)
    if H % TH != 0 or TH % (2 * p) != 0:
        raise ValueError("block_h must divide H and be a multiple of 2*(kernel_size//2)")
    n_h = H // TH
    halo_step = TH // (2 * p)            # halo block-index stride (halo block size = 2p)

    # ---- layout glue (trace-time; the pad fuses with the mandatory transpose) ----
    x_nhwc = jnp.transpose(x_nchw, (0, 2, 3, 1)).astype(jnp.bfloat16)
    x_pad = jnp.pad(x_nhwc, ((0, 0), (p, p), (p, p), (0, 0)))        # (N, H+2p, Wp, Cin)

    # weight OIHW -> (K,K,Cin,Cout) -> pad Cin to C_pad -> (K*K*C_pad, Cout_pad);
    # row order (kh, kw, c) matches the kernel's tap-concat order.
    w4 = jnp.transpose(weight_oikk, (2, 3, 1, 0)).astype(jnp.bfloat16)
    w4 = jnp.pad(w4, ((0, 0), (0, 0), (0, C_pad - Cin), (0, 0)))
    w2d = jnp.pad(w4.reshape(KKCp, Cout), ((0, 0), (0, Cout_pad - Cout)))
    b2d = jnp.pad(bias.reshape(1, Cout).astype(jnp.float32),
                  ((0, 0), (0, Cout_pad - Cout)))

    # ---- kernel -------------------------------------------------------------------
    def kernel(a_ref, halo_ref, w_ref, b_ref, o_ref, xs_ref):
        # Build the lane-padded halo slab.  Every step fully (re)writes the slab
        # (zero padding lanes + data lanes), so there is no cross-iteration state
        # and both grid axes stay "parallel".
        if Cin < C_pad:
            xs_ref[:, :, Cin:] = jnp.zeros(
                (TH + 2 * p, Wp, C_pad - Cin), jnp.bfloat16)
        xs_ref[0:TH, :, 0:Cin] = a_ref[0]
        xs_ref[TH:TH + 2 * p, :, 0:Cin] = halo_ref[0]

        # im2col: the K*K shifted (TH, W, C_pad) views stacked along the lane axis.
        # Each tap is 128-lane aligned, so the concat is plain vreg placement.
        # TODO(synk): kw in {1..K-1} starts are sublane-unaligned loads; if a bundle
        #             dump shows the load slot saturating, switch to pltpu.roll of a
        #             full-width slab + edge masking.
        taps = []
        for kh in range(K):
            for kw in range(K):
                taps.append(xs_ref[kh:kh + TH, kw:kw + W, :])
        lhs = jnp.concatenate(taps, axis=-1)               # (TH, W, K*K*C_pad)

        # Single MXU matmul, bf16 operands, f32 accumulation.
        acc = jax.lax.dot_general(
            lhs, w_ref[...],
            dimension_numbers=(((2,), (0,)), ((), ())),
            preferred_element_type=jnp.float32)            # (TH, W, Cout_pad)
        acc = acc + b_ref[...][None]                       # (1, 1, Cout_pad) bias
        o_ref[0] = acc.astype(o_ref.dtype)                 # bf16, lane-dense store

    out_padded = pl.pallas_call(
        kernel,
        out_shape=jax.ShapeDtypeStruct((N, H, W, Cout_pad), jnp.bfloat16),
        grid_spec=pltpu.PrefetchScalarGridSpec(
            num_scalar_prefetch=0,
            grid=(N, n_h),
            in_specs=[
                # padded-image rows [h*TH, h*TH + TH)
                pl.BlockSpec((1, TH, Wp, Cin), lambda n, h: (n, h, 0, 0)),
                # 2p-row bottom halo: padded-image rows [(h+1)*TH, (h+1)*TH + 2p)
                pl.BlockSpec((1, 2 * p, Wp, Cin),
                             lambda n, h: (n, (h + 1) * halo_step, 0, 0)),
                pl.BlockSpec((KKCp, Cout_pad), lambda n, h: (0, 0)),
                pl.BlockSpec((1, Cout_pad), lambda n, h: (0, 0)),
            ],
            out_specs=pl.BlockSpec((1, TH, W, Cout_pad),
                                   lambda n, h: (n, h, 0, 0)),
            scratch_shapes=[pltpu.VMEM((TH + 2 * p, Wp, C_pad), jnp.bfloat16)],
        ),
        compiler_params=pltpu.CompilerParams(
            # both axes parallel: each step is self-contained, so the v7x megacore
            # can shard the H-tiles even at batch size 1.
            dimension_semantics=("parallel", "parallel"),
            vmem_limit_bytes=int(vmem_limit),
        ),
    )(x_pad, x_pad, w2d, b2d)

    # drop the channel padding and go back to NCHW f32 (slice/transpose/cast fuse in XLA)
    return jnp.transpose(out_padded[..., :Cout], (0, 3, 1, 2)).astype(jnp.float32)


if __name__ == "__main__":
    # Small shapes consistent with the module's forward: NCHW input.
    N, Cin, H, W = 2, 4, 16, 16
    Cout, K = 8, 3

    key = jax.random.PRNGKey(0)
    kx, kw = jax.random.split(key)

    x = jax.random.normal(kx, (N, Cin, H, W), dtype=jnp.float32)
    # _conv.__init__: weight ~ Normal(0, 0.02), bias = zeros
    weight = 0.02 * jax.random.normal(kw, (Cout, Cin, K, K), dtype=jnp.float32)
    bias = jnp.zeros((Cout,), dtype=jnp.float32)

    conv_fn = jax.jit(conv_forward, static_argnames=("kernel_size", "block_h"))
    out = conv_fn(x, weight, bias, kernel_size=K, block_h=8)   # 2 H-tiles: exercises the halo
    out = jax.block_until_ready(out)
    assert out.shape == (N, Cout, H, W)

    pad = [(K // 2, K // 2), (K // 2, K // 2)]
    # reference 1: same bf16-operand / f32-accumulation numerics as the kernel
    ref_bf16 = jax.lax.conv_general_dilated(
        x.astype(jnp.bfloat16), weight.astype(jnp.bfloat16),
        window_strides=(1, 1), padding=pad,
        dimension_numbers=("NCHW", "OIHW", "NCHW"),
        preferred_element_type=jnp.float32,
    ) + bias[None, :, None, None]
    assert jnp.allclose(out, ref_bf16, atol=6e-3, rtol=6e-3), \
        float(jnp.max(jnp.abs(out - ref_bf16)))

    # reference 2: full-f32 conv; bf16 operands + bf16 output introduce ~1e-3 deviation
    ref_f32 = jax.lax.conv_general_dilated(
        x, weight, window_strides=(1, 1), padding=pad,
        dimension_numbers=("NCHW", "OIHW", "NCHW"),
    ) + bias[None, :, None, None]
    assert jnp.allclose(out, ref_f32, atol=3e-2, rtol=3e-2), \
        float(jnp.max(jnp.abs(out - ref_f32)))

    # also exercise the auto (VMEM-budgeted) block_h path
    out_auto = jax.block_until_ready(conv_fn(x, weight, bias, kernel_size=K))
    assert jnp.allclose(out_auto, out, atol=6e-3, rtol=6e-3)

    print("KERNEL_OK")
</pallas_src>

<mosaic_0001>
module attributes {stable_mosaic.version = 11 : i64} {
  func.func @kernel(%arg0: i32, %arg1: i32, %arg2: memref<1x8x18x4xbf16, #tpu.memory_space<vmem>>, %arg3: memref<1x2x18x4xbf16, #tpu.memory_space<vmem>>, %arg4: memref<1152x128xbf16, #tpu.memory_space<vmem>>, %arg5: memref<1x128xf32, #tpu.memory_space<vmem>>, %arg6: memref<1x8x16x128xbf16, #tpu.memory_space<vmem>>, %arg7: memref<10x18x128xbf16, #tpu.memory_space<vmem>>) attributes {dimension_semantics = [#tpu.dimension_semantics<parallel>, #tpu.dimension_semantics<parallel>], iteration_bounds = array<i64: 2, 2>, scalar_prefetch = 0 : i64, scratch_operands = 1 : i64, tpu.core_type = #tpu.core_type<tc>, window_params = [{transform_indices = @transform_0, window_bounds = array<i64: 1, 8, 18, 4>}, {transform_indices = @transform_1, window_bounds = array<i64: 1, 2, 18, 4>}, {pipeline_mode = #tpu.pipeline_mode<synchronous>, transform_indices = @transform_2, window_bounds = array<i64: 1152, 128>}, {pipeline_mode = #tpu.pipeline_mode<synchronous>, transform_indices = @transform_3, window_bounds = array<i64: 1, 128>}, {transform_indices = @transform_4, window_bounds = array<i64: 1, 8, 16, 128>}]} {
    %cst = arith.constant 0.000000e+00 : bf16
    %0 = vector.broadcast %cst : bf16 to vector<10x18x124xbf16>
    %c0 = arith.constant 0 : index
    %c0_0 = arith.constant 0 : index
    %c4 = arith.constant 4 : index
    %1 = vector.load %arg7[%c0, %c0_0, %c4] : memref<10x18x128xbf16, #tpu.memory_space<vmem>>, vector<10x18x124xbf16>
    tpu.vector_store %arg7[%c0, %c0_0, %c4], %0 {strides = array<i32>} : memref<10x18x128xbf16, #tpu.memory_space<vmem>>, vector<10x18x124xbf16>,
    %c0_1 = arith.constant 0 : index
    %c0_2 = arith.constant 0 : index
    %c0_3 = arith.constant 0 : index
    %c0_4 = arith.constant 0 : index
    %2 = vector.load %arg2[%c0_1, %c0_2, %c0_3, %c0_4] : memref<1x8x18x4xbf16, #tpu.memory_space<vmem>>, vector<1x8x18x4xbf16>
    %3 = vector.shape_cast %2 : vector<1x8x18x4xbf16> to vector<8x18x4xbf16>
    %c0_5 = arith.constant 0 : index
    %c0_6 = arith.constant 0 : index
    %c0_7 = arith.constant 0 : index
    %4 = vector.load %arg7[%c0_5, %c0_6, %c0_7] : memref<10x18x128xbf16, #tpu.memory_space<vmem>>, vector<8x18x4xbf16>
    tpu.vector_store %arg7[%c0_5, %c0_6, %c0_7], %3 {strides = array<i32>} : memref<10x18x128xbf16, #tpu.memory_space<vmem>>, vector<8x18x4xbf16>,
    %c0_8 = arith.constant 0 : index
    %c0_9 = arith.constant 0 : index
    %c0_10 = arith.constant 0 : index
    %c0_11 = arith.constant 0 : index
    %5 = vector.load %arg3[%c0_8, %c0_9, %c0_10, %c0_11] : memref<1x2x18x4xbf16, #tpu.memory_space<vmem>>, vector<1x2x18x4xbf16>
    %6 = vector.shape_cast %5 : vector<1x2x18x4xbf16> to vector<2x18x4xbf16>
    %c8 = arith.constant 8 : index
    %c0_12 = arith.constant 0 : index
    %c0_13 = arith.constant 0 : index
    %7 = vector.load %arg7[%c8, %c0_12, %c0_13] : memref<10x18x128xbf16, #tpu.memory_space<vmem>>, vector<2x18x4xbf16>
    tpu.vector_store %arg7[%c8, %c0_12, %c0_13], %6 {strides = array<i32>} : memref<10x18x128xbf16, #tpu.memory_space<vmem>>, vector<2x18x4xbf16>,
    %c0_14 = arith.constant 0 : index
    %c0_15 = arith.constant 0 : index
    %c0_16 = arith.constant 0 : index
    %8 = vector.load %arg7[%c0_14, %c0_15, %c0_16] : memref<10x18x128xbf16, #tpu.memory_space<vmem>>, vector<8x16x128xbf16>
    %c0_17 = arith.constant 0 : index
    %c1 = arith.constant 1 : index
    %c0_18 = arith.constant 0 : index
    %9 = vector.load %arg7[%c0_17, %c1, %c0_18] : memref<10x18x128xbf16, #tpu.memory_space<vmem>>, vector<8x16x128xbf16>
    %c0_19 = arith.constant 0 : index
    %c2 = arith.constant 2 : index
    %c0_20 = arith.constant 0 : index
    %10 = vector.load %arg7[%c0_19, %c2, %c0_20] : memref<10x18x128xbf16, #tpu.memory_space<vmem>>, vector<8x16x128xbf16>
    %c1_21 = arith.constant 1 : index
    %c0_22 = arith.constant 0 : index
    %c0_23 = arith.constant 0 : index
    %11 = vector.load %arg7[%c1_21, %c0_22, %c0_23] : memref<10x18x128xbf16, #tpu.memory_space<vmem>>, vector<8x16x128xbf16>
    %c1_24 = arith.constant 1 : index
    %c1_25 = arith.constant 1 : index
    %c0_26 = arith.constant 0 : index
    %12 = vector.load %arg7[%c1_24, %c1_25, %c0_26] : memref<10x18x128xbf16, #tpu.memory_space<vmem>>, vector<8x16x128xbf16>
    %c1_27 = arith.constant 1 : index
    %c2_28 = arith.constant 2 : index
    %c0_29 = arith.constant 0 : index
    %13 = vector.load %arg7[%c1_27, %c2_28, %c0_29] : memref<10x18x128xbf16, #tpu.memory_space<vmem>>, vector<8x16x128xbf16>
    %c2_30 = arith.constant 2 : index
    %c0_31 = arith.constant 0 : index
    %c0_32 = arith.constant 0 : index
    %14 = vector.load %arg7[%c2_30, %c0_31, %c0_32] : memref<10x18x128xbf16, #tpu.memory_space<vmem>>, vector<8x16x128xbf16>
    %c2_33 = arith.constant 2 : index
    %c1_34 = arith.constant 1 : index
    %c0_35 = arith.constant 0 : index
    %15 = vector.load %arg7[%c2_33, %c1_34, %c0_35] : memref<10x18x128xbf16, #tpu.memory_space<vmem>>, vector<8x16x128xbf16>
    %c2_36 = arith.constant 2 : index
    %c2_37 = arith.constant 2 : index
    %c0_38 = arith.constant 0 : index
    %16 = vector.load %arg7[%c2_36, %c2_37, %c0_38] : memref<10x18x128xbf16, #tpu.memory_space<vmem>>, vector<8x16x128xbf16>
    %17 = tpu.concatenate %8, %9, %10, %11, %12, %13, %14, %15, %16 in 2 : vector<8x16x128xbf16>, vector<8x16x128xbf16>, vector<8x16x128xbf16>, vector<8x16x128xbf16>, vector<8x16x128xbf16>, vector<8x16x128xbf16>, vector<8x16x128xbf16>, vector<8x16x128xbf16>, vector<8x16x128xbf16> -> vector<8x16x1152xbf16>
    %c0_39 = arith.constant 0 : index
    %c0_40 = arith.constant 0 : index
    %18 = vector.load %arg4[%c0_39, %c0_40] : memref<1152x128xbf16, #tpu.memory_space<vmem>>, vector<1152x128xbf16>
    %cst_41 = arith.constant dense<0.000000e+00> : vector<8x16x128xf32>
    %19 = tpu.matmul %17, %18, %cst_41 {dimension_numbers = #tpu.dot_dimension_numbers<[2], [0], [0, 1], [1], [0, 0, 0, 1, 1, 1], [], []>} : vector<8x16x1152xbf16>, vector<1152x128xbf16>, vector<8x16x128xf32> -> vector<8x16x128xf32>
    %c0_42 = arith.constant 0 : index
    %c0_43 = arith.constant 0 : index
    %20 = vector.load %arg5[%c0_42, %c0_43] : memref<1x128xf32, #tpu.memory_space<vmem>>, vector<1x128xf32>
    %21 = vector.shape_cast %20 : vector<1x128xf32> to vector<1x1x128xf32>
    %22 = vector.broadcast %21 : vector<1x1x128xf32> to vector<8x16x128xf32>
    %23 = arith.addf %19, %22 : vector<8x16x128xf32>
    %24 = arith.truncf %23 : vector<8x16x128xf32> to vector<8x16x128xbf16>
    %c0_44 = arith.constant 0 : index
    %c0_45 = arith.constant 0 : index
    %c0_46 = arith.constant 0 : index
    %c0_47 = arith.constant 0 : index
    %25 = vector.load %arg6[%c0_44, %c0_45, %c0_46, %c0_47] : memref<1x8x16x128xbf16, #tpu.memory_space<vmem>>, vector<1x8x16x128xbf16>
    %26 = vector.shape_cast %25 : vector<1x8x16x128xbf16> to vector<8x16x128xbf16>
    %27 = vector.shape_cast %24 : vector<8x16x128xbf16> to vector<1x8x16x128xbf16>
    tpu.vector_store %arg6[%c0_44, %c0_45, %c0_46, %c0_47], %27 {strides = array<i32>} : memref<1x8x16x128xbf16, #tpu.memory_space<vmem>>, vector<1x8x16x128xbf16>,
    return
  }
  func.func @transform_0(%arg0: i32, %arg1: i32) -> (i32, i32, i32, i32) {
    %c0_i32 = arith.constant 0 : i32
    %c0_i32_0 = arith.constant 0 : i32
    %c0_i32_1 = arith.constant 0 : i32
    return %arg0, %arg1, %c0_i32, %c0_i32_0 : i32, i32, i32, i32
  }
  func.func @transform_1(%arg0: i32, %arg1: i32) -> (i32, i32, i32, i32) {
    %c1_i32 = arith.constant 1 : i32
    %0 = arith.addi %arg1, %c1_i32 : i32
    %c4_i32 = arith.constant 4 : i32
    %1 = arith.muli %0, %c4_i32 : i32
    %c0_i32 = arith.constant 0 : i32
    %c0_i32_0 = arith.constant 0 : i32
    %c0_i32_1 = arith.constant 0 : i32
    return %arg0, %1, %c0_i32, %c0_i32_0 : i32, i32, i32, i32
  }
  func.func @transform_2(%arg0: i32, %arg1: i32) -> (i32, i32) {
    %c0_i32 = arith.constant 0 : i32
    %c0_i32_0 = arith.constant 0 : i32
    %c0_i32_1 = arith.constant 0 : i32
    return %c0_i32, %c0_i32_0 : i32, i32
  }
  func.func @transform_3(%arg0: i32, %arg1: i32) -> (i32, i32) {
    %c0_i32 = arith.constant 0 : i32
    %c0_i32_0 = arith.constant 0 : i32
    %c0_i32_1 = arith.constant 0 : i32
    return %c0_i32, %c0_i32_0 : i32, i32
  }
  func.func @transform_4(%arg0: i32, %arg1: i32) -> (i32, i32, i32, i32) {
    %c0_i32 = arith.constant 0 : i32
    %c0_i32_0 = arith.constant 0 : i32
    %c0_i32_1 = arith.constant 0 : i32
    return %arg0, %arg1, %c0_i32, %c0_i32_0 : i32, i32, i32, i32
  }
}

</mosaic_0001>

<llo_original>
// kernel: conv_forward.1
$region0: #{conv_forward.1}
  #allocation0 [shape = 'u32[]', space=smem, size = 0x4, offset = 0x4, fixed_abs, tag = 'smem constant byte address 0x4 - core index']
  #allocation1 [shape = 'u32[72,128]{1,0:T(1,128)}', space=vmem, size = 0x9000, scoped, tag = 'internal scratch']
  #allocation2 [shape = 'bf16[10,18,128]{2,1,0:T(8,128)(2,1)}', space=vmem, size = 0xf000, scoped, tag = 'scratch operand']
  %s0 = inlined_call_operand.vmem [shape: bf16[2,18,18,4], index: 0, kind: input, shape index: {}, may-alias: {0,1}]
  %s1 = inlined_call_operand.vmem [shape: bf16[2,18,18,4], index: 1, kind: input, shape index: {}, may-alias: {0,1}]
  %s2 = inlined_call_operand.vmem [shape: bf16[1152,128], index: 2, kind: input, shape index: {}]
  %s3 = inlined_call_operand.vmem [shape: f32[1,128], index: 3, kind: input, shape index: {}]
  %s4 = inlined_call_operand.vmem [shape: bf16[2,16,16,128], index: 4, kind: output, shape index: {}]
  %s5 = sld [smem:[#allocation0]]
  $region49: #{conv_forward.1} parent=0
    _
  %s7 = ssub.s32 1, %s5
  %s8 = scalar_select 0, %s7, %s5
  loop: start=0, step=1, limit=6
  $region2: #{conv_forward.1} parent=0 // loop_pre_header
    _
  $region3: #{conv_forward.1} parent=0 // loop_header
    %s10 = sphi 0, %s14
    %p11 = scmp.ge.s32.totalorder %s10, 6
    %s17 = sphi 0, %s29
    %s18 = sphi 0, %s25
    %s19 = sphi 0, %s17
    %s20 = sphi 0, %s18
    %s21 = sphi 0, %s19
    %s22 = sphi 0, %s20
    %s34 = sphi 0, %s36
    %s37 = sphi 0, %s34
    %s38 = sphi 0, %s37
    %s54 = sphi 0, %s38
    %s66 = sphi 0, %s68
    %s69 = sphi 0, %s66
    %s70 = sphi 0, %s69
    %s86 = sphi 0, %s70
    %s90 = sphi 0, %s90
    %s92 = sphi 0, %s90
    %s93 = sphi 0, %s92
    %s107 = sphi 0, %s93
    %s111 = sphi 0, %s111
    %s113 = sphi 0, %s111
    %s114 = sphi 0, %s113
    %s128 = sphi 0, %s114
    %s136 = sphi 0, %s138
    %s139 = sphi 0, %s136
    %s140 = sphi 0, %s139
    %s156 = sphi 0, %s140
  $region4: #{conv_forward.1} parent=0 // loop_header_branch
    %13 = sbr.rel (%p11) target = $region8
  $region5: #{conv_forward.1} parent=0 // loop_body
    %s15 = ssub.s32 %s10, 1
    %s16 = ssub.s32 %s10, 2
    %s23 = sadd.s32 1, %s18
    %p24 = scmp.ge.s32.totalorder %s23, 2
    %s25 = scalar_select %p24, 0, %s23
    %s26 = sadd.s32 1, %s17
    %s27 = scalar_select %p24, %s26, %s17
    %p28 = scmp.ge.s32.totalorder %s27, 2
    %s29 = scalar_select %p28, 0, %s27
    %s30 = ssub.s32 %s17, %s29
    %s31 = ssub.s32 %s18, %s25
    %s32 = sor.u32 %s30, %s31
    %p33 = scmp.eq.s32.totalorder %s32, 0
    %s35 = sadd.s32 %s34, 1
    %s36 = scalar_select %p33, %s34, %s35
    %p39 = pneg %p33
    %p40 = scmp.eq.s32.totalorder %s10, 3
    %p41 = por %p39, %p40
    %p42 = scmp.ne.s32.totalorder %s34, %s37
    %p43 = scmp.eq.s32.totalorder %s10, 0
    %p44 = por %p42, %p43
    %p45 = scmp.ne.s32.totalorder %s34, %s37
    %p46 = scmp.eq.s32.totalorder %s15, 3
    %p47 = por %p45, %p46
    %p48 = scmp.ne.s32.totalorder %s37, %s38
    %p49 = scmp.eq.s32.totalorder %s15, 0
    %p50 = por %p48, %p49
    %p51 = scmp.ne.s32.totalorder %s37, %s38
    %p52 = scmp.eq.s32.totalorder %s16, 3
    %p53 = por %p51, %p52
    %p55 = scmp.ne.s32.totalorder %s38, %s54
    %p56 = scmp.eq.s32.totalorder %s16, 0
    %p57 = por %p55, %p56
    %s58 = sadd.s32 %s18, 1
    %s59 = smul.u32 %s58, 4
    %s60 = sadd.s32 %s25, 1
    %s61 = smul.u32 %s60, 4
    %s62 = ssub.s32 %s17, %s29
    %s63 = ssub.s32 %s59, %s61
    %s64 = sor.u32 %s62, %s63
    %p65 = scmp.eq.s32.totalorder %s64, 0
    %s67 = sadd.s32 %s66, 1
    %s68 = scalar_select %p65, %s66, %s67
    %p71 = pneg %p65
    %p72 = scmp.eq.s32.totalorder %s10, 3
    %p73 = por %p71, %p72
    %p74 = scmp.ne.s32.totalorder %s66, %s69
    %p75 = scmp.eq.s32.totalorder %s10, 0
    %p76 = por %p74, %p75
    %p77 = scmp.ne.s32.totalorder %s66, %s69
    %p78 = scmp.eq.s32.totalorder %s15, 3
    %p79 = por %p77, %p78
    %p80 = scmp.ne.s32.totalorder %s69, %s70
    %p81 = scmp.eq.s32.totalorder %s15, 0
    %p82 = por %p80, %p81
    %p83 = scmp.ne.s32.totalorder %s69, %s70
    %p84 = scmp.eq.s32.totalorder %s16, 3
    %p85 = por %p83, %p84
    %p87 = scmp.ne.s32.totalorder %s70, %s86
    %p88 = scmp.eq.s32.totalorder %s16, 0
    %p89 = por %p87, %p88
    %s91 = sadd.s32 %s90, 1
    %p94 = scmp.eq.s32.totalorder %s10, 3
    %p95 = scmp.ne.s32.totalorder %s90, %s92
    %p96 = scmp.eq.s32.totalorder %s10, 0
    %p97 = por %p95, %p96
    %p98 = scmp.ne.s32.totalorder %s90, %s92
    %p99 = scmp.eq.s32.totalorder %s15, 3
    %p100 = por %p98, %p99
    %p101 = scmp.ne.s32.totalorder %s92, %s93
    %p102 = scmp.eq.s32.totalorder %s15, 0
    %p103 = por %p101, %p102
    %p104 = scmp.ne.s32.totalorder %s92, %s93
    %p105 = scmp.eq.s32.totalorder %s16, 3
    %p106 = por %p104, %p105
    %p108 = scmp.ne.s32.totalorder %s93, %s107
    %p109 = scmp.eq.s32.totalorder %s16, 0
    %p110 = por %p108, %p109
    %s112 = sadd.s32 %s111, 1
    %p115 = scmp.eq.s32.totalorder %s10, 3
    %p116 = scmp.ne.s32.totalorder %s111, %s113
    %p117 = scmp.eq.s32.totalorder %s10, 0
    %p118 = por %p116, %p117
    %p119 = scmp.ne.s32.totalorder %s111, %s113
    %p120 = scmp.eq.s32.totalorder %s15, 3
    %p121 = por %p119, %p120
    %p122 = scmp.ne.s32.totalorder %s113, %s114
    %p123 = scmp.eq.s32.totalorder %s15, 0
    %p124 = por %p122, %p123
    %p125 = scmp.ne.s32.totalorder %s113, %s114
    %p126 = scmp.eq.s32.totalorder %s16, 3
    %p127 = por %p125, %p126
    %p129 = scmp.ne.s32.totalorder %s114, %s128
    %p130 = scmp.eq.s32.totalorder %s16, 0
    %p131 = por %p129, %p130
    %s132 = ssub.s32 %s17, %s29
    %s133 = ssub.s32 %s18, %s25
    %s134 = sor.u32 %s132, %s133
    %p135 = scmp.eq.s32.totalorder %s134, 0
    %s137 = sadd.s32 %s136, 1
    %s138 = scalar_select %p135, %s136, %s137
    %p141 = pneg %p135
    %p142 = scmp.eq.s32.totalorder %s10, 3
    %p143 = por %p141, %p142
    %p144 = scmp.ne.s32.totalorder %s136, %s139
    %p145 = scmp.eq.s32.totalorder %s10, 0
    %p146 = por %p144, %p145
    %p147 = scmp.ne.s32.totalorder %s136, %s139
    %p148 = scmp.eq.s32.totalorder %s15, 3
    %p149 = por %p147, %p148
    %p150 = scmp.ne.s32.totalorder %s139, %s140
    %p151 = scmp.eq.s32.totalorder %s15, 0
    %p152 = por %p150, %p151
    %p153 = scmp.ne.s32.totalorder %s139, %s140
    %p154 = scmp.eq.s32.totalorder %s16, 3
    %p155 = por %p153, %p154
    %p157 = scmp.ne.s32.totalorder %s140, %s156
    %p158 = scmp.eq.s32.totalorder %s16, 0
    %p159 = por %p157, %p158
    %p160 = scmp.le.s32.totalorder 1, %s10
    %p161 = scmp.lt.s32.totalorder %s10, 5
    %p162 = pnand %p160, %p161
    %p163 = pneg %p162
    // Predicated region
    $region9: #{conv_forward.1} parent=5 // pred_check
      _
    $region10: #{conv_forward.1} parent=5 // pred_check_branch
      %165 = sbr.rel (%p162) target = $region12
    $region11: #{conv_forward.1} parent=5 // pred_region
      %s166 = ssub.s32 %s10, 1
      // Predicated region
      $region13: #{conv_forward.1} parent=11 // pred_check
        %p167 = pneg %p103
      $region14: #{conv_forward.1} parent=11 // pred_check_branch
        %169 = sbr.rel (%p167) target = $region16
      $region15: #{conv_forward.1} parent=11 // pred_region
        _
      $region16: #{conv_forward.1} parent=11 // pred_fallthru
        _
      // Predicated region
      $region17: #{conv_forward.1} parent=11 // pred_check
        %p170 = pneg %p124
      $region18: #{conv_forward.1} parent=11 // pred_check_branch
        %172 = sbr.rel (%p170) target = $region20
      $region19: #{conv_forward.1} parent=11 // pred_region
        _
      $region20: #{conv_forward.1} parent=11 // pred_fallthru
        _
    $region12: #{conv_forward.1} parent=5 // pred_fallthru
      _
    %p173 = scmp.lt.s32.totalorder %s10, 4
    // Predicated region
    $region21: #{conv_forward.1} parent=5 // pred_check
      %p174 = pneg %p173
    $region22: #{conv_forward.1} parent=5 // pred_check_branch
      %176 = sbr.rel (%p174) target = $region24
    $region23: #{conv_forward.1} parent=5 // pred_region
      // Predicated region
      $region25: #{conv_forward.1} parent=23 // pred_check
        %p177 = pneg %p44
      $region26: #{conv_forward.1} parent=23 // pred_check_branch
        %179 = sbr.rel (%p177) target = $region28
      $region27: #{conv_forward.1} parent=23 // pred_region
        %s180 = smul.u32 8, %s18
        %s181 = ssub.s32 18, %s180
        %p182 = scmp.lt.s32.totalorder %s181, 8
        %s183 = scalar_select %p182, %s181, 8
        %s184 = smul.u32 4, %s183
        %s185 = smul.u32 %s184, 3
        %p186 = scmp.lt.s32.totalorder %s17, 1
        %s187 = scalar_select %p186, %s17, 1
        %p188 = scmp.lt.s32.totalorder %s180, 17
        %s189 = scalar_select %p188, %s180, 17
        %s190 = smul.addr %s189, 3
        %s191 = smul.addr %s187, 54
        %s192 = sadd.s32 %s190, %s191
        %s193 = smul.addr %s192, 4
        %s194 = scalar_lea.vmem %s0, %s193
        %s195 = smul.u32 8, %s18
        %s196 = ssub.s32 18, %s195
        %p197 = scmp.lt.s32.totalorder %s196, 8
        %s198 = scalar_select %p197, %s196, 8
        %s199 = smul.u32 4, %s198
        %s200 = smul.u32 %s199, 3
      $region28: #{conv_forward.1} parent=23 // pred_fallthru
        _
      // Predicated region
      $region29: #{conv_forward.1} parent=23 // pred_check
        %p201 = pneg %p76
      $region30: #{conv_forward.1} parent=23 // pred_check_branch
        %203 = sbr.rel (%p201) target = $region32
      $region31: #{conv_forward.1} parent=23 // pred_region
        %s204 = sadd.s32 %s18, 1
        %s205 = smul.u32 %s204, 4
        %s206 = smul.u32 2, %s205
        %p207 = scmp.lt.s32.totalorder %s17, 1
        %s208 = scalar_select %p207, %s17, 1
        %p209 = scmp.lt.s32.totalorder %s206, 17
        %s210 = scalar_select %p209, %s206, 17
        %s211 = smul.addr %s210, 3
        %s212 = smul.addr %s208, 54
        %s213 = sadd.s32 %s211, %s212
        %s214 = smul.addr %s213, 4
        %s215 = scalar_lea.vmem %s1, %s214
        %s216 = sadd.s32 %s18, 1
        %s217 = smul.u32 %s216, 4
        %s218 = smul.u32 2, %s217
      $region32: #{conv_forward.1} parent=23 // pred_fallthru
        _
    $region24: #{conv_forward.1} parent=5 // pred_fallthru
      _
    %p219 = scmp.le.s32.totalorder 1, %s10
    %p220 = scmp.lt.s32.totalorder %s10, 5
    %p221 = pnand %p219, %p220
    %p222 = pneg %p221
    // Predicated region
    $region33: #{conv_forward.1} parent=5 // pred_check
      _
    $region34: #{conv_forward.1} parent=5 // pred_check_branch
      %224 = sbr.rel (%p221) target = $region36
    $region35: #{conv_forward.1} parent=5 // pred_region
      %s225 = ssub.s32 %s10, 1
      %s226 = smul.u32 8, %s20
      %s227 = ssub.s32 18, %s226
      %p228 = scmp.lt.s32.totalorder %s227, 8
      %s229 = scalar_select %p228, %s227, 8
      %s230 = smul.u32 4, %s229
      %s231 = smul.u32 %s230, 3
      %p232 = scmp.lt.s32.totalorder %s19, 1
      %s233 = scalar_select %p232, %s19, 1
      %p234 = scmp.lt.s32.totalorder %s226, 17
      %s235 = scalar_select %p234, %s226, 17
      %s236 = smul.addr %s235, 3
      %s237 = smul.addr %s233, 54
      %s238 = sadd.s32 %s236, %s237
      %s239 = smul.addr %s238, 4
      %s240 = scalar_lea.vmem %s0, %s239
      %p241 = pneg %p50
      %p242 = pneg %p47
      %s243 = sadd.s32 %s20, 1
      %s244 = smul.u32 %s243, 4
      %s245 = smul.u32 2, %s244
      %p246 = scmp.lt.s32.totalorder %s19, 1
      %s247 = scalar_select %p246, %s19, 1
      %p248 = scmp.lt.s32.totalorder %s245, 17
      %s249 = scalar_select %p248, %s245, 17
      %s250 = smul.addr %s249, 3
      %s251 = smul.addr %s247, 54
      %s252 = sadd.s32 %s250, %s251
      %s253 = smul.addr %s252, 4
      %s254 = scalar_lea.vmem %s1, %s253
      %p255 = pneg %p82
      %p256 = pneg %p79
      %p257 = pneg %p103
      %p258 = pneg %p100
      %p259 = pneg %p124
      %p260 = pneg %p121
      %p261 = pneg %p152
      %p262 = pneg %p149
      %s263 = smul.u32 8, %s20
      %p264 = scmp.lt.s32.totalorder %s19, 1
      %s265 = scalar_select %p264, %s19, 1
      %p266 = scmp.lt.s32.totalorder %s263, 15
      %s267 = scalar_select %p266, %s263, 15
      %s268 = smul.addr %s267, 2
      %s269 = smul.addr %s265, 32
      %s270 = sadd.s32 %s268, %s269
      %s271 = smul.addr %s270, 4
      %s272 = scalar_lea.vmem %s4, %s271
      %s273 = smul.u32 8, %s20
      %s274 = ssub.s32 18, %s273
      %p275 = scmp.lt.s32.totalorder %s274, 8
      %s276 = scalar_select %p275, %s274, 8
      %s277 = smul.u32 4, %s276
      %s278 = smul.u32 %s277, 3
      %p279 = scmp.lt.s32.totalorder %s19, 1
      %s280 = scalar_select %p279, %s19, 1
      %p281 = scmp.lt.s32.totalorder %s273, 17
      %s282 = scalar_select %p281, %s273, 17
      %s283 = smul.addr %s282, 3
      %s284 = smul.addr %s280, 54
      %s285 = sadd.s32 %s283, %s284
      %s286 = smul.addr %s285, 4
      %s287 = scalar_lea.vmem %s0, %s286
      %s288 = smul.u32 8, %s20
      %s289 = ssub.s32 18, %s288
      %p290 = scmp.lt.s32.totalorder %s289, 8
      %s291 = scalar_select %p290, %s289, 8
      %s292 = smul.u32 4, %s291
      %s293 = smul.u32 %s292, 3
      %s294 = sadd.s32 %s20, 1
      %s295 = smul.u32 %s294, 4
      %s296 = smul.u32 2, %s295
      %p297 = scmp.lt.s32.totalorder %s19, 1
      %s298 = scalar_select %p297, %s19, 1
      %p299 = scmp.lt.s32.totalorder %s296, 17
      %s300 = scalar_select %p299, %s296, 17
      %s301 = smul.addr %s300, 3
      %s302 = smul.addr %s298, 54
      %s303 = sadd.s32 %s301, %s302
      %s304 = smul.addr %s303, 4
      %s305 = scalar_lea.vmem %s1, %s304
      %s306 = sadd.s32 %s20, 1
      %s307 = smul.u32 %s306, 4
      %s308 = smul.u32 2, %s307
      %s309 = smul.u32 8, %s20
      %p310 = scmp.lt.s32.totalorder %s19, 1
      %s311 = scalar_select %p310, %s19, 1
      %p312 = scmp.lt.s32.totalorder %s309, 15
      %s313 = scalar_select %p312, %s309, 15
      %s314 = smul.addr %s313, 2
      %s315 = smul.addr %s311, 32
      %s316 = sadd.s32 %s314, %s315
      %s317 = smul.addr %s316, 4
      %s318 = scalar_lea.vmem %s4, %s317
      %s319 = smul.u32 8, %s20
      %vm321 = vcmask 1043488
      %322 = vst.msk [vmem:[#allocation2] sm:$0xf] %vm321, 0
      %323 = vst.msk [vmem:[#allocation2 + $0x4] sm:$0xf] %vm321, 0
      %vm324 = vcmask 1040416
      %325 = vst.msk [vmem:[#allocation2 + $0x8] sm:$0x1] %vm324, 0
      %326 = vst.msk [vmem:[#allocation2 + $0xc] sm:$0xf] %vm321, 0
      %327 = vst.msk [vmem:[#allocation2 + $0x10] sm:$0xf] %vm321, 0
      %328 = vst.msk [vmem:[#allocation2 + $0x14] sm:$0x1] %vm324, 0
      %329 = vst.msk [vmem:[#allocation2 + $0x18] sm:$0xf] %vm321, 0
      %330 = vst.msk [vmem:[#allocation2 + $0x1c] sm:$0xf] %vm321, 0
      %331 = vst.msk [vmem:[#allocation2 + $0x20] sm:$0x1] %vm324, 0
      %332 = vst.msk [vmem:[#allocation2 + $0x24] sm:$0xf] %vm321, 0
      %333 = vst.msk [vmem:[#allocation2 + $0x28] sm:$0xf] %vm321, 0
      %334 = vst.msk [vmem:[#allocation2 + $0x2c] sm:$0x1] %vm324, 0
      %335 = vst.msk [vmem:[#allocation2 + $0x30] sm:$0xf] %vm321, 0
      %336 = vst.msk [vmem:[#allocation2 + $0x34] sm:$0xf] %vm321, 0
      %337 = vst.msk [vmem:[#allocation2 + $0x38] sm:$0x1] %vm324, 0
      %338 = vst.msk [vmem:[#allocation2 + $0x3c] sm:$0xf] %vm321, 0
      %339 = vst.msk [vmem:[#allocation2 + $0x40] sm:$0xf] %vm321, 0
      %340 = vst.msk [vmem:[#allocation2 + $0x44] sm:$0x1] %vm324, 0
      %341 = vst.msk [vmem:[#allocation2 + $0x48] sm:$0xf] %vm321, 0
      %342 = vst.msk [vmem:[#allocation2 + $0x4c] sm:$0xf] %vm321, 0
      %343 = vst.msk [vmem:[#allocation2 + $0x50] sm:$0x1] %vm324, 0
      %344 = vst.msk [vmem:[#allocation2 + $0x54] sm:$0xf] %vm321, 0
      %345 = vst.msk [vmem:[#allocation2 + $0x58] sm:$0xf] %vm321, 0
      %346 = vst.msk [vmem:[#allocation2 + $0x5c] sm:$0x1] %vm324, 0
      %347 = vst.msk [vmem:[#allocation2 + $0x60] sm:$0xf] %vm321, 0
      %348 = vst.msk [vmem:[#allocation2 + $0x64] sm:$0xf] %vm321, 0
      %349 = vst.msk [vmem:[#allocation2 + $0x68] sm:$0x1] %vm324, 0
      %350 = vst.msk [vmem:[#allocation2 + $0x6c] sm:$0xf] %vm321, 0
      %351 = vst.msk [vmem:[#allocation2 + $0x70] sm:$0xf] %vm321, 0
      %352 = vst.msk [vmem:[#allocation2 + $0x74] sm:$0x1] %vm324, 0
      %v353 = vld [vmem:[%s287] sm:$0xf]
      %v354 = vld [vmem:[%s287 + $0x4] sm:$0xf]
      %v355 = vld [vmem:[%s287 + $0x8] sm:$0x1]
      %v356 = vld [vmem:[%s287 + $0xc] sm:$0xf]
      %v357 = vld [vmem:[%s287 + $0x10] sm:$0xf]
      %v358 = vld [vmem:[%s287 + $0x14] sm:$0x1]
      %v359 = vld [vmem:[%s287 + $0x18] sm:$0xf]
      %v360 = vld [vmem:[%s287 + $0x1c] sm:$0xf]
      %v361 = vld [vmem:[%s287 + $0x20] sm:$0x1]
      %v362 = vld [vmem:[%s287 + $0x24] sm:$0xf]
      %v363 = vld [vmem:[%s287 + $0x28] sm:$0xf]
      %v364 = vld [vmem:[%s287 + $0x2c] sm:$0x1]
      %v365 = vld [vmem:[%s287 + $0x30] sm:$0xf]
      %v366 = vld [vmem:[%s287 + $0x34] sm:$0xf]
      %v367 = vld [vmem:[%s287 + $0x38] sm:$0x1]
      %v368 = vld [vmem:[%s287 + $0x3c] sm:$0xf]
      %v369 = vld [vmem:[%s287 + $0x40] sm:$0xf]
      %v370 = vld [vmem:[%s287 + $0x44] sm:$0x1]
      %v371 = vld [vmem:[%s287 + $0x48] sm:$0xf]
      %v372 = vld [vmem:[%s287 + $0x4c] sm:$0xf]
      %v373 = vld [vmem:[%s287 + $0x50] sm:$0x1]
      %v374 = vld [vmem:[%s287 + $0x54] sm:$0xf]
      %v375 = vld [vmem:[%s287 + $0x58] sm:$0xf]
      %v376 = vld [vmem:[%s287 + $0x5c] sm:$0x1]
      %vm377 = vcmask 27648
      %378 = vst.msk [vmem:[#allocation2] sm:$0xf] %vm377, %v353
      %379 = vst.msk [vmem:[#allocation2 + $0x4] sm:$0xf] %vm377, %v354
      %vm380 = vcmask 24576
      %381 = vst.msk [vmem:[#allocation2 + $0x8] sm:$0x1] %vm380, %v355
      %382 = vst.msk [vmem:[#allocation2 + $0xc] sm:$0xf] %vm377, %v356
      %383 = vst.msk [vmem:[#allocation2 + $0x10] sm:$0xf] %vm377, %v357
      %384 = vst.msk [vmem:[#allocation2 + $0x14] sm:$0x1] %vm380, %v358
      %385 = vst.msk [vmem:[#allocation2 + $0x18] sm:$0xf] %vm377, %v359
      %386 = vst.msk [vmem:[#allocation2 + $0x1c] sm:$0xf] %vm377, %v360
      %387 = vst.msk [vmem:[#allocation2 + $0x20] sm:$0x1] %vm380, %v361
      %388 = vst.msk [vmem:[#allocation2 + $0x24] sm:$0xf] %vm377, %v362
      %389 = vst.msk [vmem:[#allocation2 + $0x28] sm:$0xf] %vm377, %v363
      %390 = vst.msk [vmem:[#allocation2 + $0x2c] sm:$0x1] %vm380, %v364
      %391 = vst.msk [vmem:[#allocation2 + $0x30] sm:$0xf] %vm377, %v365
      %392 = vst.msk [vmem:[#allocation2 + $0x34] sm:$0xf] %vm377, %v366
      %393 = vst.msk [vmem:[#allocation2 + $0x38] sm:$0x1] %vm380, %v367
      %394 = vst.msk [vmem:[#allocation2 + $0x3c] sm:$0xf] %vm377, %v368
      %395 = vst.msk [vmem:[#allocation2 + $0x40] sm:$0xf] %vm377, %v369
      %396 = vst.msk [vmem:[#allocation2 + $0x44] sm:$0x1] %vm380, %v370
      %397 = vst.msk [vmem:[#allocation2 + $0x48] sm:$0xf] %vm377, %v371
      %398 = vst.msk [vmem:[#allocation2 + $0x4c] sm:$0xf] %vm377, %v372
      %399 = vst.msk [vmem:[#allocation2 + $0x50] sm:$0x1] %vm380, %v373
      %400 = vst.msk [vmem:[#allocation2 + $0x54] sm:$0xf] %vm377, %v374
      %401 = vst.msk [vmem:[#allocation2 + $0x58] sm:$0xf] %vm377, %v375
      %402 = vst.msk [vmem:[#allocation2 + $0x5c] sm:$0x1] %vm380, %v376
      %v403 = vld [vmem:[%s305] sm:$0xf]
      %v404 = vld [vmem:[%s305 + $0x4] sm:$0xf]
      %v405 = vld [vmem:[%s305 + $0x8] sm:$0x1]
      %v406 = vld [vmem:[%s305 + $0xc] sm:$0xf]
      %v407 = vld [vmem:[%s305 + $0x10] sm:$0xf]
      %v408 = vld [vmem:[%s305 + $0x14] sm:$0x1]
      %s409 = scalar_lea.vmem [#allocation2], 96
      %410 = vst.msk [vmem:[%s409] sm:$0xf] %vm377, %v403
      %411 = vst.msk [vmem:[%s409 + $0x4] sm:$0xf] %vm377, %v404
      %412 = vst.msk [vmem:[%s409 + $0x8] sm:$0x1] %vm380, %v405
      %413 = vst.msk [vmem:[%s409 + $0xc] sm:$0xf] %vm377, %v406
      %414 = vst.msk [vmem:[%s409 + $0x10] sm:$0xf] %vm377, %v407
      %415 = vst.msk [vmem:[%s409 + $0x14] sm:$0x1] %vm380, %v408
      %v416 = vld [vmem:[#allocation2] sm:$0xf]
      %v417 = vld [vmem:[#allocation2 + $0x4] sm:$0xf]
      %v418 = vld [vmem:[#allocation2 + $0xc] sm:$0xf]
      %v419 = vld [vmem:[#allocation2 + $0x10] sm:$0xf]
      %v420 = vld [vmem:[#allocation2 + $0x18] sm:$0xf]
      %v421 = vld [vmem:[#allocation2 + $0x1c] sm:$0xf]
      %v422 = vld [vmem:[#allocation2 + $0x24] sm:$0xf]
      %v423 = vld [vmem:[#allocation2 + $0x28] sm:$0xf]
      %v424 = vld [vmem:[#allocation2 + $0x30] sm:$0xf]
      %v425 = vld [vmem:[#allocation2 + $0x34] sm:$0xf]
      %v426 = vld [vmem:[#allocation2 + $0x3c] sm:$0xf]
      %v427 = vld [vmem:[#allocation2 + $0x40] sm:$0xf]
      %v428 = vld [vmem:[#allocation2 + $0x48] sm:$0xf]
      %v429 = vld [vmem:[#allocation2 + $0x4c] sm:$0xf]
      %v430 = vld [vmem:[#allocation2 + $0x54] sm:$0xf]
      %v431 = vld [vmem:[#allocation2 + $0x58] sm:$0xf]
      %v432 = vld [vmem:[#allocation2 + $0x8] sm:$0x1]
      %v433 = vld [vmem:[#allocation2 + $0x14] sm:$0x1]
      %v434 = vld [vmem:[#allocation2 + $0x20] sm:$0x1]
      %v435 = vld [vmem:[#allocation2 + $0x2c] sm:$0x1]
      %v436 = vld [vmem:[#allocation2 + $0x38] sm:$0x1]
      %v437 = vld [vmem:[#allocation2 + $0x44] sm:$0x1]
      %v438 = vld [vmem:[#allocation2 + $0x50] sm:$0x1]
      %v439 = vld [vmem:[#allocation2 + $0x5c] sm:$0x1]
      %v440 = vld [vmem:[#allocation2] sm:$0xe]
      %v441 = vld [vmem:[#allocation2 + $0xc] sm:$0xe]
      %v442 = vld [vmem:[#allocation2 + $0x18] sm:$0xe]
      %v443 = vld [vmem:[#allocation2 + $0x24] sm:$0xe]
      %v444 = vld [vmem:[#allocation2 + $0x30] sm:$0xe]
      %v445 = vld [vmem:[#allocation2 + $0x3c] sm:$0xe]
      %v446 = vld [vmem:[#allocation2 + $0x48] sm:$0xe]
      %v447 = vld [vmem:[#allocation2 + $0x54] sm:$0xe]
      %s448 = scalar_lea.vmem [#allocation2], 12
      %v449 = vld [vmem:[%s448] sm:$0xf]
      %v450 = vld [vmem:[%s448 + $0x4] sm:$0xf]
      %v451 = vld [vmem:[%s448 + $0xc] sm:$0xf]
      %v452 = vld [vmem:[%s448 + $0x10] sm:$0xf]
      %v453 = vld [vmem:[%s448 + $0x18] sm:$0xf]
      %v454 = vld [vmem:[%s448 + $0x1c] sm:$0xf]
      %v455 = vld [vmem:[%s448 + $0x24] sm:$0xf]
      %v456 = vld [vmem:[%s448 + $0x28] sm:$0xf]
      %v457 = vld [vmem:[%s448 + $0x30] sm:$0xf]
      %v458 = vld [vmem:[%s448 + $0x34] sm:$0xf]
      %v459 = vld [vmem:[%s448 + $0x3c] sm:$0xf]
      %v460 = vld [vmem:[%s448 + $0x40] sm:$0xf]
      %v461 = vld [vmem:[%s448 + $0x48] sm:$0xf]
      %v462 = vld [vmem:[%s448 + $0x4c] sm:$0xf]
      %v463 = vld [vmem:[%s448 + $0x54] sm:$0xf]
      %v464 = vld [vmem:[%s448 + $0x58] sm:$0xf]
      %v465 = vld [vmem:[%s448 + $0x8] sm:$0x1]
      %v466 = vld [vmem:[%s448 + $0x14] sm:$0x1]
      %v467 = vld [vmem:[%s448 + $0x20] sm:$0x1]
      %v468 = vld [vmem:[%s448 + $0x2c] sm:$0x1]
      %v469 = vld [vmem:[%s448 + $0x38] sm:$0x1]
      %v470 = vld [vmem:[%s448 + $0x44] sm:$0x1]
      %v471 = vld [vmem:[%s448 + $0x50] sm:$0x1]
      %v472 = vld [vmem:[%s448 + $0x5c] sm:$0x1]
      %v473 = vld [vmem:[%s448] sm:$0xe]
      %v474 = vld [vmem:[%s448 + $0xc] sm:$0xe]
      %v475 = vld [vmem:[%s448 + $0x18] sm:$0xe]
      %v476 = vld [vmem:[%s448 + $0x24] sm:$0xe]
      %v477 = vld [vmem:[%s448 + $0x30] sm:$0xe]
      %v478 = vld [vmem:[%s448 + $0x3c] sm:$0xe]
      %v479 = vld [vmem:[%s448 + $0x48] sm:$0xe]
      %v480 = vld [vmem:[%s448 + $0x54] sm:$0xe]
      %s481 = scalar_lea.vmem [#allocation2], 24
      %v482 = vld [vmem:[%s481] sm:$0xf]
      %v483 = vld [vmem:[%s481 + $0x4] sm:$0xf]
      %v484 = vld [vmem:[%s481 + $0xc] sm:$0xf]
      %v485 = vld [vmem:[%s481 + $0x10] sm:$0xf]
      %v486 = vld [vmem:[%s481 + $0x18] sm:$0xf]
      %v487 = vld [vmem:[%s481 + $0x1c] sm:$0xf]
      %v488 = vld [vmem:[%s481 + $0x24] sm:$0xf]
      %v489 = vld [vmem:[%s481 + $0x28] sm:$0xf]
      %v490 = vld [vmem:[%s481 + $0x30] sm:$0xf]
      %v491 = vld [vmem:[%s481 + $0x34] sm:$0xf]
      %v492 = vld [vmem:[%s481 + $0x3c] sm:$0xf]
      %v493 = vld [vmem:[%s481 + $0x40] sm:$0xf]
      %v494 = vld [vmem:[%s481 + $0x48] sm:$0xf]
      %v495 = vld [vmem:[%s481 + $0x4c] sm:$0xf]
      %v496 = vld [vmem:[%s481 + $0x54] sm:$0xf]
      %v497 = vld [vmem:[%s481 + $0x58] sm:$0xf]
      %v498 = vld [vmem:[%s481 + $0x8] sm:$0x1]
      %v499 = vld [vmem:[%s481 + $0x14] sm:$0x1]
      %v500 = vld [vmem:[%s481 + $0x20] sm:$0x1]
      %v501 = vld [vmem:[%s481 + $0x2c] sm:$0x1]
      %v502 = vld [vmem:[%s481 + $0x38] sm:$0x1]
      %v503 = vld [vmem:[%s481 + $0x44] sm:$0x1]
      %v504 = vld [vmem:[%s481 + $0x50] sm:$0x1]
      %v505 = vld [vmem:[%s481 + $0x5c] sm:$0x1]
      %v506 = vld [vmem:[%s481] sm:$0xe]
      %v507 = vld [vmem:[%s481 + $0xc] sm:$0xe]
      %v508 = vld [vmem:[%s481 + $0x18] sm:$0xe]
      %v509 = vld [vmem:[%s481 + $0x24] sm:$0xe]
      %v510 = vld [vmem:[%s481 + $0x30] sm:$0xe]
      %v511 = vld [vmem:[%s481 + $0x3c] sm:$0xe]
      %v512 = vld [vmem:[%s481 + $0x48] sm:$0xe]
      %v513 = vld [vmem:[%s481 + $0x54] sm:$0xe]
      %v530 = vunpack.c.l.b16 %v416
      %v531 = vunpack.c.l.b16 %v417
      %v532 = vunpack.c.l.b16 %v418
      %v533 = vunpack.c.l.b16 %v419
      %v534 = vunpack.c.l.b16 %v420
      %v535 = vunpack.c.l.b16 %v421
      %v536 = vunpack.c.l.b16 %v422
      %v537 = vunpack.c.l.b16 %v423
      %v538 = vunpack.c.l.b16 %v424
      %v539 = vunpack.c.l.b16 %v425
      %v540 = vunpack.c.l.b16 %v426
      %v541 = vunpack.c.l.b16 %v427
      %v542 = vunpack.c.l.b16 %v428
      %v543 = vunpack.c.l.b16 %v429
      %v544 = vunpack.c.l.b16 %v430
      %v545 = vunpack.c.l.b16 %v431
      %v546 = vpack.c.b16 %v531, %v530
      %v547 = vpack.c.b16 %v533, %v532
      %v548 = vpack.c.b16 %v535, %v534
      %v549 = vpack.c.b16 %v537, %v536
      %v550 = vpack.c.b16 %v539, %v538
      %v551 = vpack.c.b16 %v541, %v540
      %v552 = vpack.c.b16 %v543, %v542
      %v553 = vpack.c.b16 %v545, %v544
      %v570 = vunpack.c.l.b16 %v432
      %v571 = vunpack.c.l.b16 %v433
      %v572 = vunpack.c.l.b16 %v434
      %v573 = vunpack.c.l.b16 %v435
      %v574 = vunpack.c.l.b16 %v436
      %v575 = vunpack.c.l.b16 %v437
      %v576 = vunpack.c.l.b16 %v438
      %v577 = vunpack.c.l.b16 %v439
      %v578 = vpack.c.b16 %v570, %v570
      %v579 = vpack.c.b16 %v571, %v571
      %v580 = vpack.c.b16 %v572, %v572
      %v581 = vpack.c.b16 %v573, %v573
      %v582 = vpack.c.b16 %v574, %v574
      %v583 = vpack.c.b16 %v575, %v575
      %v584 = vpack.c.b16 %v576, %v576
      %v585 = vpack.c.b16 %v577, %v577
      %vm586 = vsmask.f32 7424
      %v588 = vshrl.u32 %v546, 16
      %v590 = vshll.u32 %v546, 16
      %v592 = vrot.slane %v590, 1
      %v593 = vor.u32 %v588, %v592
      %v595 = vshll.u32 %v578, 16
      %v597 = vrot.slane %v595, 1
      %v598 = vsel %vm586, %v593, %v597
      %v600 = vshrl.u32 %v547, 16
      %v602 = vshll.u32 %v547, 16
      %v604 = vrot.slane %v602, 1
      %v605 = vor.u32 %v600, %v604
      %v607 = vshll.u32 %v579, 16
      %v609 = vrot.slane %v607, 1
      %v610 = vsel %vm586, %v605, %v609
      %v612 = vshrl.u32 %v548, 16
      %v614 = vshll.u32 %v548, 16
      %v616 = vrot.slane %v614, 1
      %v617 = vor.u32 %v612, %v616
      %v619 = vshll.u32 %v580, 16
      %v621 = vrot.slane %v619, 1
      %v622 = vsel %vm586, %v617, %v621
      %v624 = vshrl.u32 %v549, 16
      %v626 = vshll.u32 %v549, 16
      %v628 = vrot.slane %v626, 1
      %v629 = vor.u32 %v624, %v628
      %v631 = vshll.u32 %v581, 16
      %v633 = vrot.slane %v631, 1
      %v634 = vsel %vm586, %v629, %v633
      %v636 = vshrl.u32 %v550, 16
      %v638 = vshll.u32 %v550, 16
      %v640 = vrot.slane %v638, 1
      %v641 = vor.u32 %v636, %v640
      %v643 = vshll.u32 %v582, 16
      %v645 = vrot.slane %v643, 1
      %v646 = vsel %vm586, %v641, %v645
      %v648 = vshrl.u32 %v551, 16
      %v650 = vshll.u32 %v551, 16
      %v652 = vrot.slane %v650, 1
      %v653 = vor.u32 %v648, %v652
      %v655 = vshll.u32 %v583, 16
      %v657 = vrot.slane %v655, 1
      %v658 = vsel %vm586, %v653, %v657
      %v660 = vshrl.u32 %v552, 16
      %v662 = vshll.u32 %v552, 16
      %v664 = vrot.slane %v662, 1
      %v665 = vor.u32 %v660, %v664
      %v667 = vshll.u32 %v584, 16
      %v669 = vrot.slane %v667, 1
      %v670 = vsel %vm586, %v665, %v669
      %v672 = vshrl.u32 %v553, 16
      %v674 = vshll.u32 %v553, 16
      %v676 = vrot.slane %v674, 1
      %v677 = vor.u32 %v672, %v676
      %v679 = vshll.u32 %v585, 16
      %v681 = vrot.slane %v679, 1
      %v682 = vsel %vm586, %v677, %v681
      %v699 = vunpack.c.l.b16 %v440
      %v700 = vunpack.c.l.b16 %v441
      %v701 = vunpack.c.l.b16 %v442
      %v702 = vunpack.c.l.b16 %v443
      %v703 = vunpack.c.l.b16 %v444
      %v704 = vunpack.c.l.b16 %v445
      %v705 = vunpack.c.l.b16 %v446
      %v706 = vunpack.c.l.b16 %v447
      %v707 = vpack.c.b16 %v531, %v699
      %v708 = vpack.c.b16 %v533, %v700
      %v709 = vpack.c.b16 %v535, %v701
      %v710 = vpack.c.b16 %v537, %v702
      %v711 = vpack.c.b16 %v539, %v703
      %v712 = vpack.c.b16 %v541, %v704
      %v713 = vpack.c.b16 %v543, %v705
      %v714 = vpack.c.b16 %v545, %v706
      %vm715 = vcmask 1046528
      %v716 = vrot.slane %v707, 1
      %v717 = vrot.slane %v578, 1
      %v718 = vsel %vm715, %v716, %v717
      %v719 = vrot.slane %v708, 1
      %v720 = vrot.slane %v579, 1
      %v721 = vsel %vm715, %v719, %v720
      %v722 = vrot.slane %v709, 1
      %v723 = vrot.slane %v580, 1
      %v724 = vsel %vm715, %v722, %v723
      %v725 = vrot.slane %v710, 1
      %v726 = vrot.slane %v581, 1
      %v727 = vsel %vm715, %v725, %v726
      %v728 = vrot.slane %v711, 1
      %v729 = vrot.slane %v582, 1
      %v730 = vsel %vm715, %v728, %v729
      %v731 = vrot.slane %v712, 1
      %v732 = vrot.slane %v583, 1
      %v733 = vsel %vm715, %v731, %v732
      %v734 = vrot.slane %v713, 1
      %v735 = vrot.slane %v584, 1
      %v736 = vsel %vm715, %v734, %v735
      %v737 = vrot.slane %v714, 1
      %v738 = vrot.slane %v585, 1
      %v739 = vsel %vm715, %v737, %v738
      %v764 = vunpack.c.l.b16 %v449
      %v765 = vunpack.c.l.b16 %v450
      %v766 = vunpack.c.l.b16 %v451
      %v767 = vunpack.c.l.b16 %v452
      %v768 = vunpack.c.l.b16 %v453
      %v769 = vunpack.c.l.b16 %v454
      %v770 = vunpack.c.l.b16 %v455
      %v771 = vunpack.c.l.b16 %v456
      %v772 = vunpack.c.l.b16 %v457
      %v773 = vunpack.c.l.b16 %v458
      %v774 = vunpack.c.l.b16 %v459
      %v775 = vunpack.c.l.b16 %v460
      %v776 = vunpack.c.l.b16 %v461
      %v777 = vunpack.c.l.b16 %v462
      %v778 = vunpack.c.l.b16 %v463
      %v779 = vunpack.c.l.b16 %v464
      %v780 = vpack.c.b16 %v765, %v764
      %v781 = vpack.c.b16 %v767, %v766
      %v782 = vpack.c.b16 %v769, %v768
      %v783 = vpack.c.b16 %v771, %v770
      %v784 = vpack.c.b16 %v773, %v772
      %v785 = vpack.c.b16 %v775, %v774
      %v786 = vpack.c.b16 %v777, %v776
      %v787 = vpack.c.b16 %v779, %v778
      %v804 = vunpack.c.l.b16 %v465
      %v805 = vunpack.c.l.b16 %v466
      %v806 = vunpack.c.l.b16 %v467
      %v807 = vunpack.c.l.b16 %v468
      %v808 = vunpack.c.l.b16 %v469
      %v809 = vunpack.c.l.b16 %v470
      %v810 = vunpack.c.l.b16 %v471
      %v811 = vunpack.c.l.b16 %v472
      %v812 = vpack.c.b16 %v804, %v804
      %v813 = vpack.c.b16 %v805, %v805
      %v814 = vpack.c.b16 %v806, %v806
      %v815 = vpack.c.b16 %v807, %v807
      %v816 = vpack.c.b16 %v808, %v808
      %v817 = vpack.c.b16 %v809, %v809
      %v818 = vpack.c.b16 %v810, %v810
      %v819 = vpack.c.b16 %v811, %v811
      %v821 = vshrl.u32 %v780, 16
      %v823 = vshll.u32 %v780, 16
      %v825 = vrot.slane %v823, 1
      %v826 = vor.u32 %v821, %v825
      %v828 = vshll.u32 %v812, 16
      %v830 = vrot.slane %v828, 1
      %v831 = vsel %vm586, %v826, %v830
      %v833 = vshrl.u32 %v781, 16
      %v835 = vshll.u32 %v781, 16
      %v837 = vrot.slane %v835, 1
      %v838 = vor.u32 %v833, %v837
      %v840 = vshll.u32 %v813, 16
      %v842 = vrot.slane %v840, 1
      %v843 = vsel %vm586, %v838, %v842
      %v845 = vshrl.u32 %v782, 16
      %v847 = vshll.u32 %v782, 16
      %v849 = vrot.slane %v847, 1
      %v850 = vor.u32 %v845, %v849
      %v852 = vshll.u32 %v814, 16
      %v854 = vrot.slane %v852, 1
      %v855 = vsel %vm586, %v850, %v854
      %v857 = vshrl.u32 %v783, 16
      %v859 = vshll.u32 %v783, 16
      %v861 = vrot.slane %v859, 1
      %v862 = vor.u32 %v857, %v861
      %v864 = vshll.u32 %v815, 16
      %v866 = vrot.slane %v864, 1
      %v867 = vsel %vm586, %v862, %v866
      %v869 = vshrl.u32 %v784, 16
      %v871 = vshll.u32 %v784, 16
      %v873 = vrot.slane %v871, 1
      %v874 = vor.u32 %v869, %v873
      %v876 = vshll.u32 %v816, 16
      %v878 = vrot.slane %v876, 1
      %v879 = vsel %vm586, %v874, %v878
      %v881 = vshrl.u32 %v785, 16
      %v883 = vshll.u32 %v785, 16
      %v885 = vrot.slane %v883, 1
      %v886 = vor.u32 %v881, %v885
      %v888 = vshll.u32 %v817, 16
      %v890 = vrot.slane %v888, 1
      %v891 = vsel %vm586, %v886, %v890
      %v893 = vshrl.u32 %v786, 16
      %v895 = vshll.u32 %v786, 16
      %v897 = vrot.slane %v895, 1
      %v898 = vor.u32 %v893, %v897
      %v900 = vshll.u32 %v818, 16
      %v902 = vrot.slane %v900, 1
      %v903 = vsel %vm586, %v898, %v902
      %v905 = vshrl.u32 %v787, 16
      %v907 = vshll.u32 %v787, 16
      %v909 = vrot.slane %v907, 1
      %v910 = vor.u32 %v905, %v909
      %v912 = vshll.u32 %v819, 16
      %v914 = vrot.slane %v912, 1
      %v915 = vsel %vm586, %v910, %v914
      %v932 = vunpack.c.l.b16 %v473
      %v933 = vunpack.c.l.b16 %v474
      %v934 = vunpack.c.l.b16 %v475
      %v935 = vunpack.c.l.b16 %v476
      %v936 = vunpack.c.l.b16 %v477
      %v937 = vunpack.c.l.b16 %v478
      %v938 = vunpack.c.l.b16 %v479
      %v939 = vunpack.c.l.b16 %v480
      %v940 = vpack.c.b16 %v765, %v932
      %v941 = vpack.c.b16 %v767, %v933
      %v942 = vpack.c.b16 %v769, %v934
      %v943 = vpack.c.b16 %v771, %v935
      %v944 = vpack.c.b16 %v773, %v936
      %v945 = vpack.c.b16 %v775, %v937
      %v946 = vpack.c.b16 %v777, %v938
      %v947 = vpack.c.b16 %v779, %v939
      %v948 = vrot.slane %v940, 1
      %v949 = vrot.slane %v812, 1
      %v950 = vsel %vm715, %v948, %v949
      %v951 = vrot.slane %v941, 1
      %v952 = vrot.slane %v813, 1
      %v953 = vsel %vm715, %v951, %v952
      %v954 = vrot.slane %v942, 1
      %v955 = vrot.slane %v814, 1
      %v956 = vsel %vm715, %v954, %v955
      %v957 = vrot.slane %v943, 1
      %v958 = vrot.slane %v815, 1
      %v959 = vsel %vm715, %v957, %v958
      %v960 = vrot.slane %v944, 1
      %v961 = vrot.slane %v816, 1
      %v962 = vsel %vm715, %v960, %v961
      %v963 = vrot.slane %v945, 1
      %v964 = vrot.slane %v817, 1
      %v965 = vsel %vm715, %v963, %v964
      %v966 = vrot.slane %v946, 1
      %v967 = vrot.slane %v818, 1
      %v968 = vsel %vm715, %v966, %v967
      %v969 = vrot.slane %v947, 1
      %v970 = vrot.slane %v819, 1
      %v971 = vsel %vm715, %v969, %v970
      %v996 = vunpack.c.l.b16 %v482
      %v997 = vunpack.c.l.b16 %v483
      %v998 = vunpack.c.l.b16 %v484
      %v999 = vunpack.c.l.b16 %v485
      %v1000 = vunpack.c.l.b16 %v486
      %v1001 = vunpack.c.l.b16 %v487
      %v1002 = vunpack.c.l.b16 %v488
      %v1003 = vunpack.c.l.b16 %v489
      %v1004 = vunpack.c.l.b16 %v490
      %v1005 = vunpack.c.l.b16 %v491
      %v1006 = vunpack.c.l.b16 %v492
      %v1007 = vunpack.c.l.b16 %v493
      %v1008 = vunpack.c.l.b16 %v494
      %v1009 = vunpack.c.l.b16 %v495
      %v1010 = vunpack.c.l.b16 %v496
      %v1011 = vunpack.c.l.b16 %v497
      %v1012 = vpack.c.b16 %v997, %v996
      %v1013 = vpack.c.b16 %v999, %v998
      %v1014 = vpack.c.b16 %v1001, %v1000
      %v1015 = vpack.c.b16 %v1003, %v1002
      %v1016 = vpack.c.b16 %v1005, %v1004
      %v1017 = vpack.c.b16 %v1007, %v1006
      %v1018 = vpack.c.b16 %v1009, %v1008
      %v1019 = vpack.c.b16 %v1011, %v1010
      %v1036 = vunpack.c.l.b16 %v498
      %v1037 = vunpack.c.l.b16 %v499
      %v1038 = vunpack.c.l.b16 %v500
      %v1039 = vunpack.c.l.b16 %v501
      %v1040 = vunpack.c.l.b16 %v502
      %v1041 = vunpack.c.l.b16 %v503
      %v1042 = vunpack.c.l.b16 %v504
      %v1043 = vunpack.c.l.b16 %v505
      %v1044 = vpack.c.b16 %v1036, %v1036
      %v1045 = vpack.c.b16 %v1037, %v1037
      %v1046 = vpack.c.b16 %v1038, %v1038
      %v1047 = vpack.c.b16 %v1039, %v1039
      %v1048 = vpack.c.b16 %v1040, %v1040
      %v1049 = vpack.c.b16 %v1041, %v1041
      %v1050 = vpack.c.b16 %v1042, %v1042
      %v1051 = vpack.c.b16 %v1043, %v1043
      %v1053 = vshrl.u32 %v1012, 16
      %v1055 = vshll.u32 %v1012, 16
      %v1057 = vrot.slane %v1055, 1
      %v1058 = vor.u32 %v1053, %v1057
      %v1060 = vshll.u32 %v1044, 16
      %v1062 = vrot.slane %v1060, 1
      %v1063 = vsel %vm586, %v1058, %v1062
      %v1065 = vshrl.u32 %v1013, 16
      %v1067 = vshll.u32 %v1013, 16
      %v1069 = vrot.slane %v1067, 1
      %v1070 = vor.u32 %v1065, %v1069
      %v1072 = vshll.u32 %v1045, 16
      %v1074 = vrot.slane %v1072, 1
      %v1075 = vsel %vm586, %v1070, %v1074
      %v1077 = vshrl.u32 %v1014, 16
      %v1079 = vshll.u32 %v1014, 16
      %v1081 = vrot.slane %v1079, 1
      %v1082 = vor.u32 %v1077, %v1081
      %v1084 = vshll.u32 %v1046, 16
      %v1086 = vrot.slane %v1084, 1
      %v1087 = vsel %vm586, %v1082, %v1086
      %v1089 = vshrl.u32 %v1015, 16
      %v1091 = vshll.u32 %v1015, 16
      %v1093 = vrot.slane %v1091, 1
      %v1094 = vor.u32 %v1089, %v1093
      %v1096 = vshll.u32 %v1047, 16
      %v1098 = vrot.slane %v1096, 1
      %v1099 = vsel %vm586, %v1094, %v1098
      %v1101 = vshrl.u32 %v1016, 16
      %v1103 = vshll.u32 %v1016, 16
      %v1105 = vrot.slane %v1103, 1
      %v1106 = vor.u32 %v1101, %v1105
      %v1108 = vshll.u32 %v1048, 16
      %v1110 = vrot.slane %v1108, 1
      %v1111 = vsel %vm586, %v1106, %v1110
      %v1113 = vshrl.u32 %v1017, 16
      %v1115 = vshll.u32 %v1017, 16
      %v1117 = vrot.slane %v1115, 1
      %v1118 = vor.u32 %v1113, %v1117
      %v1120 = vshll.u32 %v1049, 16
      %v1122 = vrot.slane %v1120, 1
      %v1123 = vsel %vm586, %v1118, %v1122
      %v1125 = vshrl.u32 %v1018, 16
      %v1127 = vshll.u32 %v1018, 16
      %v1129 = vrot.slane %v1127, 1
      %v1130 = vor.u32 %v1125, %v1129
      %v1132 = vshll.u32 %v1050, 16
      %v1134 = vrot.slane %v1132, 1
      %v1135 = vsel %vm586, %v1130, %v1134
      %v1137 = vshrl.u32 %v1019, 16
      %v1139 = vshll.u32 %v1019, 16
      %v1141 = vrot.slane %v1139, 1
      %v1142 = vor.u32 %v1137, %v1141
      %v1144 = vshll.u32 %v1051, 16
      %v1146 = vrot.slane %v1144, 1
      %v1147 = vsel %vm586, %v1142, %v1146
      %v1164 = vunpack.c.l.b16 %v506
      %v1165 = vunpack.c.l.b16 %v507
      %v1166 = vunpack.c.l.b16 %v508
      %v1167 = vunpack.c.l.b16 %v509
      %v1168 = vunpack.c.l.b16 %v510
      %v1169 = vunpack.c.l.b16 %v511
      %v1170 = vunpack.c.l.b16 %v512
      %v1171 = vunpack.c.l.b16 %v513
      %v1172 = vpack.c.b16 %v997, %v1164
      %v1173 = vpack.c.b16 %v999, %v1165
      %v1174 = vpack.c.b16 %v1001, %v1166
      %v1175 = vpack.c.b16 %v1003, %v1167
      %v1176 = vpack.c.b16 %v1005, %v1168
      %v1177 = vpack.c.b16 %v1007, %v1169
      %v1178 = vpack.c.b16 %v1009, %v1170
      %v1179 = vpack.c.b16 %v1011, %v1171
      %v1180 = vrot.slane %v1172, 1
      %v1181 = vrot.slane %v1044, 1
      %v1182 = vsel %vm715, %v1180, %v1181
      %v1183 = vrot.slane %v1173, 1
      %v1184 = vrot.slane %v1045, 1
      %v1185 = vsel %vm715, %v1183, %v1184
      %v1186 = vrot.slane %v1174, 1
      %v1187 = vrot.slane %v1046, 1
      %v1188 = vsel %vm715, %v1186, %v1187
      %v1189 = vrot.slane %v1175, 1
      %v1190 = vrot.slane %v1047, 1
      %v1191 = vsel %vm715, %v1189, %v1190
      %v1192 = vrot.slane %v1176, 1
      %v1193 = vrot.slane %v1048, 1
      %v1194 = vsel %vm715, %v1192, %v1193
      %v1195 = vrot.slane %v1177, 1
      %v1196 = vrot.slane %v1049, 1
      %v1197 = vsel %vm715, %v1195, %v1196
      %v1198 = vrot.slane %v1178, 1
      %v1199 = vrot.slane %v1050, 1
      %v1200 = vsel %vm715, %v1198, %v1199
      %v1201 = vrot.slane %v1179, 1
      %v1202 = vrot.slane %v1051, 1
      %v1203 = vsel %vm715, %v1201, %v1202
      %v1212 = vld [vmem:[%s2] sm:$0xf]
      %v1213 = vld [vmem:[%s2 + $0x4] sm:$0xf]
      %v1214 = vld [vmem:[%s2 + $0x8] sm:$0xf]
      %v1215 = vld [vmem:[%s2 + $0xc] sm:$0xf]
      %v1216 = vld [vmem:[%s2 + $0x10] sm:$0xf]
      %v1217 = vld [vmem:[%s2 + $0x14] sm:$0xf]
      %v1218 = vld [vmem:[%s2 + $0x18] sm:$0xf]
      %v1219 = vld [vmem:[%s2 + $0x1c] sm:$0xf]
      %v1220 = vld [vmem:[%s2 + $0x20] sm:$0xf]
      %v1221 = vld [vmem:[%s2 + $0x24] sm:$0xf]
      %v1222 = vld [vmem:[%s2 + $0x28] sm:$0xf]
      %v1223 = vld [vmem:[%s2 + $0x2c] sm:$0xf]
      %v1224 = vld [vmem:[%s2 + $0x30] sm:$0xf]
      %v1225 = vld [vmem:[%s2 + $0x34] sm:$0xf]
      %v1226 = vld [vmem:[%s2 + $0x38] sm:$0xf]
      %v1227 = vld [vmem:[%s2 + $0x3c] sm:$0xf]
      %v1228 = vld [vmem:[%s2 + $0x40] sm:$0xf]
      %v1229 = vld [vmem:[%s2 + $0x44] sm:$0xf]
      %v1230 = vld [vmem:[%s2 + $0x48] sm:$0xf]
      %v1231 = vld [vmem:[%s2 + $0x4c] sm:$0xf]
      %v1232 = vld [vmem:[%s2 + $0x50] sm:$0xf]
      %v1233 = vld [vmem:[%s2 + $0x54] sm:$0xf]
      %v1234 = vld [vmem:[%s2 + $0x58] sm:$0xf]
      %v1235 = vld [vmem:[%s2 + $0x5c] sm:$0xf]
      %v1236 = vld [vmem:[%s2 + $0x60] sm:$0xf]
      %v1237 = vld [vmem:[%s2 + $0x64] sm:$0xf]
      %v1238 = vld [vmem:[%s2 + $0x68] sm:$0xf]
      %v1239 = vld [vmem:[%s2 + $0x6c] sm:$0xf]
      %v1240 = vld [vmem:[%s2 + $0x70] sm:$0xf]
      %v1241 = vld [vmem:[%s2 + $0x74] sm:$0xf]
      %v1242 = vld [vmem:[%s2 + $0x78] sm:$0xf]
      %v1243 = vld [vmem:[%s2 + $0x7c] sm:$0xf]
      %v1244 = vld [vmem:[%s2 + $0x80] sm:$0xf]
      %v1245 = vld [vmem:[%s2 + $0x84] sm:$0xf]
      %v1246 = vld [vmem:[%s2 + $0x88] sm:$0xf]
      %v1247 = vld [vmem:[%s2 + $0x8c] sm:$0xf]
      %v1248 = vld [vmem:[%s2 + $0x90] sm:$0xf]
      %v1249 = vld [vmem:[%s2 + $0x94] sm:$0xf]
      %v1250 = vld [vmem:[%s2 + $0x98] sm:$0xf]
      %v1251 = vld [vmem:[%s2 + $0x9c] sm:$0xf]
      %v1252 = vld [vmem:[%s2 + $0xa0] sm:$0xf]
      %v1253 = vld [vmem:[%s2 + $0xa4] sm:$0xf]
      %v1254 = vld [vmem:[%s2 + $0xa8] sm:$0xf]
      %v1255 = vld [vmem:[%s2 + $0xac] sm:$0xf]
      %v1256 = vld [vmem:[%s2 + $0xb0] sm:$0xf]
      %v1257 = vld [vmem:[%s2 + $0xb4] sm:$0xf]
      %v1258 = vld [vmem:[%s2 + $0xb8] sm:$0xf]
      %v1259 = vld [vmem:[%s2 + $0xbc] sm:$0xf]
      %v1260 = vld [vmem:[%s2 + $0xc0] sm:$0xf]
      %v1261 = vld [vmem:[%s2 + $0xc4] sm:$0xf]
      %v1262 = vld [vmem:[%s2 + $0xc8] sm:$0xf]
      %v1263 = vld [vmem:[%s2 + $0xcc] sm:$0xf]
      %v1264 = vld [vmem:[%s2 + $0xd0] sm:$0xf]
      %v1265 = vld [vmem:[%s2 + $0xd4] sm:$0xf]
      %v1266 = vld [vmem:[%s2 + $0xd8] sm:$0xf]
      %v1267 = vld [vmem:[%s2 + $0xdc] sm:$0xf]
      %v1268 = vld [vmem:[%s2 + $0xe0] sm:$0xf]
      %v1269 = vld [vmem:[%s2 + $0xe4] sm:$0xf]
      %v1270 = vld [vmem:[%s2 + $0xe8] sm:$0xf]
      %v1271 = vld [vmem:[%s2 + $0xec] sm:$0xf]
      %v1272 = vld [vmem:[%s2 + $0xf0] sm:$0xf]
      %v1273 = vld [vmem:[%s2 + $0xf4] sm:$0xf]
      %v1274 = vld [vmem:[%s2 + $0xf8] sm:$0xf]
      %v1275 = vld [vmem:[%s2 + $0xfc] sm:$0xf]
      %v1276 = vld [vmem:[%s2 + $0x100] sm:$0xf]
      %v1277 = vld [vmem:[%s2 + $0x104] sm:$0xf]
      %v1278 = vld [vmem:[%s2 + $0x108] sm:$0xf]
      %v1279 = vld [vmem:[%s2 + $0x10c] sm:$0xf]
      %v1280 = vld [vmem:[%s2 + $0x110] sm:$0xf]
      %v1281 = vld [vmem:[%s2 + $0x114] sm:$0xf]
      %v1282 = vld [vmem:[%s2 + $0x118] sm:$0xf]
      %v1283 = vld [vmem:[%s2 + $0x11c] sm:$0xf]
      %v1284 = vld [vmem:[%s2 + $0x120] sm:$0xf]
      %v1285 = vld [vmem:[%s2 + $0x124] sm:$0xf]
      %v1286 = vld [vmem:[%s2 + $0x128] sm:$0xf]
      %v1287 = vld [vmem:[%s2 + $0x12c] sm:$0xf]
      %v1288 = vld [vmem:[%s2 + $0x130] sm:$0xf]
      %v1289 = vld [vmem:[%s2 + $0x134] sm:$0xf]
      %v1290 = vld [vmem:[%s2 + $0x138] sm:$0xf]
      %v1291 = vld [vmem:[%s2 + $0x13c] sm:$0xf]
      %v1292 = vld [vmem:[%s2 + $0x140] sm:$0xf]
      %v1293 = vld [vmem:[%s2 + $0x144] sm:$0xf]
      %v1294 = vld [vmem:[%s2 + $0x148] sm:$0xf]
      %v1295 = vld [vmem:[%s2 + $0x14c] sm:$0xf]
      %v1296 = vld [vmem:[%s2 + $0x150] sm:$0xf]
      %v1297 = vld [vmem:[%s2 + $0x154] sm:$0xf]
      %v1298 = vld [vmem:[%s2 + $0x158] sm:$0xf]
      %v1299 = vld [vmem:[%s2 + $0x15c] sm:$0xf]
      %v1300 = vld [vmem:[%s2 + $0x160] sm:$0xf]
      %v1301 = vld [vmem:[%s2 + $0x164] sm:$0xf]
      %v1302 = vld [vmem:[%s2 + $0x168] sm:$0xf]
      %v1303 = vld [vmem:[%s2 + $0x16c] sm:$0xf]
      %v1304 = vld [vmem:[%s2 + $0x170] sm:$0xf]
      %v1305 = vld [vmem:[%s2 + $0x174] sm:$0xf]
      %v1306 = vld [vmem:[%s2 + $0x178] sm:$0xf]
      %v1307 = vld [vmem:[%s2 + $0x17c] sm:$0xf]
      %v1308 = vld [vmem:[%s2 + $0x180] sm:$0xf]
      %v1309 = vld [vmem:[%s2 + $0x184] sm:$0xf]
      %v1310 = vld [vmem:[%s2 + $0x188] sm:$0xf]
      %v1311 = vld [vmem:[%s2 + $0x18c] sm:$0xf]
      %v1312 = vld [vmem:[%s2 + $0x190] sm:$0xf]
      %v1313 = vld [vmem:[%s2 + $0x194] sm:$0xf]
      %v1314 = vld [vmem:[%s2 + $0x198] sm:$0xf]
      %v1315 = vld [vmem:[%s2 + $0x19c] sm:$0xf]
      %v1316 = vld [vmem:[%s2 + $0x1a0] sm:$0xf]
      %v1317 = vld [vmem:[%s2 + $0x1a4] sm:$0xf]
      %v1318 = vld [vmem:[%s2 + $0x1a8] sm:$0xf]
      %v1319 = vld [vmem:[%s2 + $0x1ac] sm:$0xf]
      %v1320 = vld [vmem:[%s2 + $0x1b0] sm:$0xf]
      %v1321 = vld [vmem:[%s2 + $0x1b4] sm:$0xf]
      %v1322 = vld [vmem:[%s2 + $0x1b8] sm:$0xf]
      %v1323 = vld [vmem:[%s2 + $0x1bc] sm:$0xf]
      %v1324 = vld [vmem:[%s2 + $0x1c0] sm:$0xf]
      %v1325 = vld [vmem:[%s2 + $0x1c4] sm:$0xf]
      %v1326 = vld [vmem:[%s2 + $0x1c8] sm:$0xf]
      %v1327 = vld [vmem:[%s2 + $0x1cc] sm:$0xf]
      %v1328 = vld [vmem:[%s2 + $0x1d0] sm:$0xf]
      %v1329 = vld [vmem:[%s2 + $0x1d4] sm:$0xf]
      %v1330 = vld [vmem:[%s2 + $0x1d8] sm:$0xf]
      %v1331 = vld [vmem:[%s2 + $0x1dc] sm:$0xf]
      %v1332 = vld [vmem:[%s2 + $0x1e0] sm:$0xf]
      %v1333 = vld [vmem:[%s2 + $0x1e4] sm:$0xf]
      %v1334 = vld [vmem:[%s2 + $0x1e8] sm:$0xf]
      %v1335 = vld [vmem:[%s2 + $0x1ec] sm:$0xf]
      %v1336 = vld [vmem:[%s2 + $0x1f0] sm:$0xf]
      %v1337 = vld [vmem:[%s2 + $0x1f4] sm:$0xf]
      %v1338 = vld [vmem:[%s2 + $0x1f8] sm:$0xf]
      %v1339 = vld [vmem:[%s2 + $0x1fc] sm:$0xf]
      %v1340 = vld [vmem:[%s2 + $0x200] sm:$0xf]
      %v1341 = vld [vmem:[%s2 + $0x204] sm:$0xf]
      %v1342 = vld [vmem:[%s2 + $0x208] sm:$0xf]
      %v1343 = vld [vmem:[%s2 + $0x20c] sm:$0xf]
      %v1344 = vld [vmem:[%s2 + $0x210] sm:$0xf]
      %v1345 = vld [vmem:[%s2 + $0x214] sm:$0xf]
      %v1346 = vld [vmem:[%s2 + $0x218] sm:$0xf]
      %v1347 = vld [vmem:[%s2 + $0x21c] sm:$0xf]
      %v1348 = vld [vmem:[%s2 + $0x220] sm:$0xf]
      %v1349 = vld [vmem:[%s2 + $0x224] sm:$0xf]
      %v1350 = vld [vmem:[%s2 + $0x228] sm:$0xf]
      %v1351 = vld [vmem:[%s2 + $0x22c] sm:$0xf]
      %v1352 = vld [vmem:[%s2 + $0x230] sm:$0xf]
      %v1353 = vld [vmem:[%s2 + $0x234] sm:$0xf]
      %v1354 = vld [vmem:[%s2 + $0x238] sm:$0xf]
      %v1355 = vld [vmem:[%s2 + $0x23c] sm:$0xf]
      %v1356 = vld [vmem:[%s3] sm:$0x1]
      %v1358 = vperm.slane %v1356, 0
      %v1504 = vunpack.c.l.b16 %v1212
      %v1505 = vunpack.c.l.b16 %v1213
      %v1506 = vunpack.c.l.b16 %v1214
      %v1507 = vunpack.c.l.b16 %v1215
      %v1508 = vunpack.c.l.b16 %v1216
      %v1509 = vunpack.c.l.b16 %v1217
      %v1510 = vunpack.c.l.b16 %v1218
      %v1511 = vunpack.c.l.b16 %v1219
      %v1512 = vunpack.c.l.b16 %v1220
      %v1513 = vunpack.c.l.b16 %v1221
      %v1514 = vunpack.c.l.b16 %v1222
      %v1515 = vunpack.c.l.b16 %v1223
      %v1516 = vunpack.c.l.b16 %v1224
      %v1517 = vunpack.c.l.b16 %v1225
      %v1518 = vunpack.c.l.b16 %v1226
      %v1519 = vunpack.c.l.b16 %v1227
      %v1520 = vunpack.c.l.b16 %v1228
      %v1521 = vunpack.c.l.b16 %v1229
      %v1522 = vunpack.c.l.b16 %v1230
      %v1523 = vunpack.c.l.b16 %v1231
      %v1524 = vunpack.c.l.b16 %v1232
      %v1525 = vunpack.c.l.b16 %v1233
      %v1526 = vunpack.c.l.b16 %v1234
      %v1527 = vunpack.c.l.b16 %v1235
      %v1528 = vunpack.c.l.b16 %v1236
      %v1529 = vunpack.c.l.b16 %v1237
      %v1530 = vunpack.c.l.b16 %v1238
      %v1531 = vunpack.c.l.b16 %v1239
      %v1532 = vunpack.c.l.b16 %v1240
      %v1533 = vunpack.c.l.b16 %v1241
      %v1534 = vunpack.c.l.b16 %v1242
      %v1535 = vunpack.c.l.b16 %v1243
      %v1536 = vunpack.c.l.b16 %v1244
      %v1537 = vunpack.c.l.b16 %v1245
      %v1538 = vunpack.c.l.b16 %v1246
      %v1539 = vunpack.c.l.b16 %v1247
      %v1540 = vunpack.c.l.b16 %v1248
      %v1541 = vunpack.c.l.b16 %v1249
      %v1542 = vunpack.c.l.b16 %v1250
      %v1543 = vunpack.c.l.b16 %v1251
      %v1544 = vunpack.c.l.b16 %v1252
      %v1545 = vunpack.c.l.b16 %v1253
      %v1546 = vunpack.c.l.b16 %v1254
      %v1547 = vunpack.c.l.b16 %v1255
      %v1548 = vunpack.c.l.b16 %v1256
      %v1549 = vunpack.c.l.b16 %v1257
      %v1550 = vunpack.c.l.b16 %v1258
      %v1551 = vunpack.c.l.b16 %v1259
      %v1552 = vunpack.c.l.b16 %v1260
      %v1553 = vunpack.c.l.b16 %v1261
      %v1554 = vunpack.c.l.b16 %v1262
      %v1555 = vunpack.c.l.b16 %v1263
      %v1556 = vunpack.c.l.b16 %v1264
      %v1557 = vunpack.c.l.b16 %v1265
      %v1558 = vunpack.c.l.b16 %v1266
      %v1559 = vunpack.c.l.b16 %v1267
      %v1560 = vunpack.c.l.b16 %v1268
      %v1561 = vunpack.c.l.b16 %v1269
      %v1562 = vunpack.c.l.b16 %v1270
      %v1563 = vunpack.c.l.b16 %v1271
      %v1564 = vunpack.c.l.b16 %v1272
      %v1565 = vunpack.c.l.b16 %v1273
      %v1566 = vunpack.c.l.b16 %v1274
      %v1567 = vunpack.c.l.b16 %v1275
      %v1568 = vunpack.c.l.b16 %v1276
      %v1569 = vunpack.c.l.b16 %v1277
      %v1570 = vunpack.c.l.b16 %v1278
      %v1571 = vunpack.c.l.b16 %v1279
      %v1572 = vunpack.c.l.b16 %v1280
      %v1573 = vunpack.c.l.b16 %v1281
      %v1574 = vunpack.c.l.b16 %v1282
      %v1575 = vunpack.c.l.b16 %v1283
      %v1576 = vunpack.c.l.b16 %v1284
      %v1577 = vunpack.c.l.b16 %v1285
      %v1578 = vunpack.c.l.b16 %v1286
      %v1579 = vunpack.c.l.b16 %v1287
      %v1580 = vunpack.c.l.b16 %v1288
      %v1581 = vunpack.c.l.b16 %v1289
      %v1582 = vunpack.c.l.b16 %v1290
      %v1583 = vunpack.c.l.b16 %v1291
      %v1584 = vunpack.c.l.b16 %v1292
      %v1585 = vunpack.c.l.b16 %v1293
      %v1586 = vunpack.c.l.b16 %v1294
      %v1587 = vunpack.c.l.b16 %v1295
      %v1588 = vunpack.c.l.b16 %v1296
      %v1589 = vunpack.c.l.b16 %v1297
      %v1590 = vunpack.c.l.b16 %v1298
      %v1591 = vunpack.c.l.b16 %v1299
      %v1592 = vunpack.c.l.b16 %v1300
      %v1593 = vunpack.c.l.b16 %v1301
      %v1594 = vunpack.c.l.b16 %v1302
      %v1595 = vunpack.c.l.b16 %v1303
      %v1596 = vunpack.c.l.b16 %v1304
      %v1597 = vunpack.c.l.b16 %v1305
      %v1598 = vunpack.c.l.b16 %v1306
      %v1599 = vunpack.c.l.b16 %v1307
      %v1600 = vunpack.c.l.b16 %v1308
      %v1601 = vunpack.c.l.b16 %v1309
      %v1602 = vunpack.c.l.b16 %v1310
      %v1603 = vunpack.c.l.b16 %v1311
      %v1604 = vunpack.c.l.b16 %v1312
      %v1605 = vunpack.c.l.b16 %v1313
      %v1606 = vunpack.c.l.b16 %v1314
      %v1607 = vunpack.c.l.b16 %v1315
      %v1608 = vunpack.c.l.b16 %v1316
      %v1609 = vunpack.c.l.b16 %v1317
      %v1610 = vunpack.c.l.b16 %v1318
      %v1611 = vunpack.c.l.b16 %v1319
      %v1612 = vunpack.c.l.b16 %v1320
      %v1613 = vunpack.c.l.b16 %v1321
      %v1614 = vunpack.c.l.b16 %v1322
      %v1615 = vunpack.c.l.b16 %v1323
      %v1616 = vunpack.c.l.b16 %v1324
      %v1617 = vunpack.c.l.b16 %v1325
      %v1618 = vunpack.c.l.b16 %v1326
      %v1619 = vunpack.c.l.b16 %v1327
      %v1620 = vunpack.c.l.b16 %v1328
      %v1621 = vunpack.c.l.b16 %v1329
      %v1622 = vunpack.c.l.b16 %v1330
      %v1623 = vunpack.c.l.b16 %v1331
      %v1624 = vunpack.c.l.b16 %v1332
      %v1625 = vunpack.c.l.b16 %v1333
      %v1626 = vunpack.c.l.b16 %v1334
      %v1627 = vunpack.c.l.b16 %v1335
      %v1628 = vunpack.c.l.b16 %v1336
      %v1629 = vunpack.c.l.b16 %v1337
      %v1630 = vunpack.c.l.b16 %v1338
      %v1631 = vunpack.c.l.b16 %v1339
      %v1632 = vunpack.c.l.b16 %v1340
      %v1633 = vunpack.c.l.b16 %v1341
      %v1634 = vunpack.c.l.b16 %v1342
      %v1635 = vunpack.c.l.b16 %v1343
      %v1636 = vunpack.c.l.b16 %v1344
      %v1637 = vunpack.c.l.b16 %v1345
      %v1638 = vunpack.c.l.b16 %v1346
      %v1639 = vunpack.c.l.b16 %v1347
      %v1640 = vunpack.c.l.b16 %v1348
      %v1641 = vunpack.c.l.b16 %v1349
      %v1642 = vunpack.c.l.b16 %v1350
      %v1643 = vunpack.c.l.b16 %v1351
      %v1644 = vunpack.c.l.b16 %v1352
      %v1645 = vunpack.c.l.b16 %v1353
      %v1646 = vunpack.c.l.b16 %v1354
      %v1647 = vunpack.c.l.b16 %v1355
      %v1648 = vpack.c.b16 %v1505, %v1504
      %v1649 = vpack.c.b16 %v1507, %v1506
      %v1650 = vpack.c.b16 %v1509, %v1508
      %v1651 = vpack.c.b16 %v1511, %v1510
      %v1652 = vpack.c.b16 %v1513, %v1512
      %v1653 = vpack.c.b16 %v1515, %v1514
      %v1654 = vpack.c.b16 %v1517, %v1516
      %v1655 = vpack.c.b16 %v1519, %v1518
      %v1656 = vpack.c.b16 %v1521, %v1520
      %v1657 = vpack.c.b16 %v1523, %v1522
      %v1658 = vpack.c.b16 %v1525, %v1524
      %v1659 = vpack.c.b16 %v1527, %v1526
      %v1660 = vpack.c.b16 %v1529, %v1528
      %v1661 = vpack.c.b16 %v1531, %v1530
      %v1662 = vpack.c.b16 %v1533, %v1532
      %v1663 = vpack.c.b16 %v1535, %v1534
      %v1664 = vpack.c.b16 %v1537, %v1536
      %v1665 = vpack.c.b16 %v1539, %v1538
      %v1666 = vpack.c.b16 %v1541, %v1540
      %v1667 = vpack.c.b16 %v1543, %v1542
      %v1668 = vpack.c.b16 %v1545, %v1544
      %v1669 = vpack.c.b16 %v1547, %v1546
      %v1670 = vpack.c.b16 %v1549, %v1548
      %v1671 = vpack.c.b16 %v1551, %v1550
      %v1672 = vpack.c.b16 %v1553, %v1552
      %v1673 = vpack.c.b16 %v1555, %v1554
      %v1674 = vpack.c.b16 %v1557, %v1556
      %v1675 = vpack.c.b16 %v1559, %v1558
      %v1676 = vpack.c.b16 %v1561, %v1560
      %v1677 = vpack.c.b16 %v1563, %v1562
      %v1678 = vpack.c.b16 %v1565, %v1564
      %v1679 = vpack.c.b16 %v1567, %v1566
      %v1680 = vpack.c.b16 %v1569, %v1568
      %v1681 = vpack.c.b16 %v1571, %v1570
      %v1682 = vpack.c.b16 %v1573, %v1572
      %v1683 = vpack.c.b16 %v1575, %v1574
      %v1684 = vpack.c.b16 %v1577, %v1576
      %v1685 = vpack.c.b16 %v1579, %v1578
      %v1686 = vpack.c.b16 %v1581, %v1580
      %v1687 = vpack.c.b16 %v1583, %v1582
      %v1688 = vpack.c.b16 %v1585, %v1584
      %v1689 = vpack.c.b16 %v1587, %v1586
      %v1690 = vpack.c.b16 %v1589, %v1588
      %v1691 = vpack.c.b16 %v1591, %v1590
      %v1692 = vpack.c.b16 %v1593, %v1592
      %v1693 = vpack.c.b16 %v1595, %v1594
      %v1694 = vpack.c.b16 %v1597, %v1596
      %v1695 = vpack.c.b16 %v1599, %v1598
      %v1696 = vpack.c.b16 %v1601, %v1600
      %v1697 = vpack.c.b16 %v1603, %v1602
      %v1698 = vpack.c.b16 %v1605, %v1604
      %v1699 = vpack.c.b16 %v1607, %v1606
      %v1700 = vpack.c.b16 %v1609, %v1608
      %v1701 = vpack.c.b16 %v1611, %v1610
      %v1702 = vpack.c.b16 %v1613, %v1612
      %v1703 = vpack.c.b16 %v1615, %v1614
      %v1704 = vpack.c.b16 %v1617, %v1616
      %v1705 = vpack.c.b16 %v1619, %v1618
      %v1706 = vpack.c.b16 %v1621, %v1620
      %v1707 = vpack.c.b16 %v1623, %v1622
      %v1708 = vpack.c.b16 %v1625, %v1624
      %v1709 = vpack.c.b16 %v1627, %v1626
      %v1710 = vpack.c.b16 %v1629, %v1628
      %v1711 = vpack.c.b16 %v1631, %v1630
      %v1712 = vpack.c.b16 %v1633, %v1632
      %v1713 = vpack.c.b16 %v1635, %v1634
      %v1714 = vpack.c.b16 %v1637, %v1636
      %v1715 = vpack.c.b16 %v1639, %v1638
      %v1716 = vpack.c.b16 %v1641, %v1640
      %v1717 = vpack.c.b16 %v1643, %v1642
      %v1718 = vpack.c.b16 %v1645, %v1644
      %v1719 = vpack.c.b16 %v1647, %v1646
      %1792 = vmatpush.bf16.msra.mxu0 %v1655
      %1793 = vmatpush.bf16.msra.mxu0 %v1654
      %1794 = vmatpush.bf16.msra.mxu0 %v1653
      %1795 = vmatpush.bf16.msra.mxu0 %v1652
      %1796 = vmatpush.bf16.msra.mxu0 %v1651
      %1797 = vmatpush.bf16.msra.mxu0 %v1650
      %1798 = vmatpush.bf16.msra.mxu0 %v1649
      %1799 = vmatpush.bf16.msra.mxu0 %v1648
      %1800 = vmatmul.bf16.gmra.mxu0 %v546
      %v1801 = vpop.f32.mrf.mxu0
      %v1802 = vadd.f32 %v1358, %v1801
      %v1803 = vpop.f32.mrf.mxu0
      %v1804 = vadd.f32 %v1358, %v1803
      %1805 = vmatmul.bf16.gmra.mxu0 %v547
      %v1806 = vpop.f32.mrf.mxu0
      %v1807 = vadd.f32 %v1358, %v1806
      %v1808 = vpop.f32.mrf.mxu0
      %v1809 = vadd.f32 %v1358, %v1808
      %1810 = vmatmul.bf16.gmra.mxu0 %v548
      %v1811 = vpop.f32.mrf.mxu0
      %v1812 = vadd.f32 %v1358, %v1811
      %v1813 = vpop.f32.mrf.mxu0
      %v1814 = vadd.f32 %v1358, %v1813
      %1815 = vmatmul.bf16.gmra.mxu0 %v549
      %v1816 = vpop.f32.mrf.mxu0
      %v1817 = vadd.f32 %v1358, %v1816
      %v1818 = vpop.f32.mrf.mxu0
      %v1819 = vadd.f32 %v1358, %v1818
      %1820 = vmatmul.bf16.gmra.mxu0 %v550
      %v1821 = vpop.f32.mrf.mxu0
      %v1822 = vadd.f32 %v1358, %v1821
      %v1823 = vpop.f32.mrf.mxu0
      %v1824 = vadd.f32 %v1358, %v1823
      %1825 = vmatmul.bf16.gmra.mxu0 %v551
      %v1826 = vpop.f32.mrf.mxu0
      %v1827 = vadd.f32 %v1358, %v1826
      %v1828 = vpop.f32.mrf.mxu0
      %v1829 = vadd.f32 %v1358, %v1828
      %1830 = vmatmul.bf16.gmra.mxu0 %v552
      %v1831 = vpop.f32.mrf.mxu0
      %v1832 = vadd.f32 %v1358, %v1831
      %v1833 = vpop.f32.mrf.mxu0
      %v1834 = vadd.f32 %v1358, %v1833
      %1835 = vmatmul.bf16.gmra.mxu0 %v553
      %v1836 = vpop.f32.mrf.mxu0
      %v1837 = vadd.f32 %v1358, %v1836
      %v1838 = vpop.f32.mrf.mxu0
      %v1839 = vadd.f32 %v1358, %v1838
      %1840 = vdwg.mxu0
      %1841 = vmatpush.bf16.msra.mxu0 %v1663
      %1842 = vmatpush.bf16.msra.mxu0 %v1662
      %1843 = vmatpush.bf16.msra.mxu0 %v1661
      %1844 = vmatpush.bf16.msra.mxu0 %v1660
      %1845 = vmatpush.bf16.msra.mxu0 %v1659
      %1846 = vmatpush.bf16.msra.mxu0 %v1658
      %1847 = vmatpush.bf16.msra.mxu0 %v1657
      %1848 = vmatpush.bf16.msra.mxu0 %v1656
      %1849 = vmatmul.bf16.gmra.mxu0 %v598
      %v1850 = vpop.f32.mrf.mxu0
      %v1851 = vadd.f32 %v1802, %v1850
      %v1852 = vpop.f32.mrf.mxu0
      %v1853 = vadd.f32 %v1804, %v1852
      %1854 = vmatmul.bf16.gmra.mxu0 %v610
      %v1855 = vpop.f32.mrf.mxu0
      %v1856 = vadd.f32 %v1807, %v1855
      %v1857 = vpop.f32.mrf.mxu0
      %v1858 = vadd.f32 %v1809, %v1857
      %1859 = vmatmul.bf16.gmra.mxu0 %v622
      %v1860 = vpop.f32.mrf.mxu0
      %v1861 = vadd.f32 %v1812, %v1860
      %v1862 = vpop.f32.mrf.mxu0
      %v1863 = vadd.f32 %v1814, %v1862
      %1864 = vmatmul.bf16.gmra.mxu0 %v634
      %v1865 = vpop.f32.mrf.mxu0
      %v1866 = vadd.f32 %v1817, %v1865
      %v1867 = vpop.f32.mrf.mxu0
      %v1868 = vadd.f32 %v1819, %v1867
      %1869 = vmatmul.bf16.gmra.mxu0 %v646
      %v1870 = vpop.f32.mrf.mxu0
      %v1871 = vadd.f32 %v1822, %v1870
      %v1872 = vpop.f32.mrf.mxu0
      %v1873 = vadd.f32 %v1824, %v1872
      %1874 = vmatmul.bf16.gmra.mxu0 %v658
      %v1875 = vpop.f32.mrf.mxu0
      %v1876 = vadd.f32 %v1827, %v1875
      %v1877 = vpop.f32.mrf.mxu0
      %v1878 = vadd.f32 %v1829, %v1877
      %1879 = vmatmul.bf16.gmra.mxu0 %v670
      %v1880 = vpop.f32.mrf.mxu0
      %v1881 = vadd.f32 %v1832, %v1880
      %v1882 = vpop.f32.mrf.mxu0
      %v1883 = vadd.f32 %v1834, %v1882
      %1884 = vmatmul.bf16.gmra.mxu0 %v682
      %v1885 = vpop.f32.mrf.mxu0
      %v1886 = vadd.f32 %v1837, %v1885
      %v1887 = vpop.f32.mrf.mxu0
      %v1888 = vadd.f32 %v1839, %v1887
      %1889 = vdwg.mxu0
      %1890 = vmatpush.bf16.msra.mxu0 %v1671
      %1891 = vmatpush.bf16.msra.mxu0 %v1670
      %1892 = vmatpush.bf16.msra.mxu0 %v1669
      %1893 = vmatpush.bf16.msra.mxu0 %v1668
      %1894 = vmatpush.bf16.msra.mxu0 %v1667
      %1895 = vmatpush.bf16.msra.mxu0 %v1666
      %1896 = vmatpush.bf16.msra.mxu0 %v1665
      %1897 = vmatpush.bf16.msra.mxu0 %v1664
      %1898 = vmatmul.bf16.gmra.mxu0 %v718
      %v1899 = vpop.f32.mrf.mxu0
      %v1900 = vadd.f32 %v1851, %v1899
      %v1901 = vpop.f32.mrf.mxu0
      %v1902 = vadd.f32 %v1853, %v1901
      %1903 = vmatmul.bf16.gmra.mxu0 %v721
      %v1904 = vpop.f32.mrf.mxu0
      %v1905 = vadd.f32 %v1856, %v1904
      %v1906 = vpop.f32.mrf.mxu0
      %v1907 = vadd.f32 %v1858, %v1906
      %1908 = vmatmul.bf16.gmra.mxu0 %v724
      %v1909 = vpop.f32.mrf.mxu0
      %v1910 = vadd.f32 %v1861, %v1909
      %v1911 = vpop.f32.mrf.mxu0
      %v1912 = vadd.f32 %v1863, %v1911
      %1913 = vmatmul.bf16.gmra.mxu0 %v727
      %v1914 = vpop.f32.mrf.mxu0
      %v1915 = vadd.f32 %v1866, %v1914
      %v1916 = vpop.f32.mrf.mxu0
      %v1917 = vadd.f32 %v1868, %v1916
      %1918 = vmatmul.bf16.gmra.mxu0 %v730
      %v1919 = vpop.f32.mrf.mxu0
      %v1920 = vadd.f32 %v1871, %v1919
      %v1921 = vpop.f32.mrf.mxu0
      %v1922 = vadd.f32 %v1873, %v1921
      %1923 = vmatmul.bf16.gmra.mxu0 %v733
      %v1924 = vpop.f32.mrf.mxu0
      %v1925 = vadd.f32 %v1876, %v1924
      %v1926 = vpop.f32.mrf.mxu0
      %v1927 = vadd.f32 %v1878, %v1926
      %1928 = vmatmul.bf16.gmra.mxu0 %v736
      %v1929 = vpop.f32.mrf.mxu0
      %v1930 = vadd.f32 %v1881, %v1929
      %v1931 = vpop.f32.mrf.mxu0
      %v1932 = vadd.f32 %v1883, %v1931
      %1933 = vmatmul.bf16.gmra.mxu0 %v739
      %v1934 = vpop.f32.mrf.mxu0
      %v1935 = vadd.f32 %v1886, %v1934
      %v1936 = vpop.f32.mrf.mxu0
      %v1937 = vadd.f32 %v1888, %v1936
      %1938 = vdwg.mxu0
      %1939 = vmatpush.bf16.msra.mxu0 %v1679
      %1940 = vmatpush.bf16.msra.mxu0 %v1678
      %1941 = vmatpush.bf16.msra.mxu0 %v1677
      %1942 = vmatpush.bf16.msra.mxu0 %v1676
      %1943 = vmatpush.bf16.msra.mxu0 %v1675
      %1944 = vmatpush.bf16.msra.mxu0 %v1674
      %1945 = vmatpush.bf16.msra.mxu0 %v1673
      %1946 = vmatpush.bf16.msra.mxu0 %v1672
      %1947 = vmatmul.bf16.gmra.mxu0 %v780
      %v1948 = vpop.f32.mrf.mxu0
      %v1949 = vadd.f32 %v1900, %v1948
      %v1950 = vpop.f32.mrf.mxu0
      %v1951 = vadd.f32 %v1902, %v1950
      %1952 = vmatmul.bf16.gmra.mxu0 %v781
      %v1953 = vpop.f32.mrf.mxu0
      %v1954 = vadd.f32 %v1905, %v1953
      %v1955 = vpop.f32.mrf.mxu0
      %v1956 = vadd.f32 %v1907, %v1955
      %1957 = vmatmul.bf16.gmra.mxu0 %v782
      %v1958 = vpop.f32.mrf.mxu0
      %v1959 = vadd.f32 %v1910, %v1958
      %v1960 = vpop.f32.mrf.mxu0
      %v1961 = vadd.f32 %v1912, %v1960
      %1962 = vmatmul.bf16.gmra.mxu0 %v783
      %v1963 = vpop.f32.mrf.mxu0
      %v1964 = vadd.f32 %v1915, %v1963
      %v1965 = vpop.f32.mrf.mxu0
      %v1966 = vadd.f32 %v1917, %v1965
      %1967 = vmatmul.bf16.gmra.mxu0 %v784
      %v1968 = vpop.f32.mrf.mxu0
      %v1969 = vadd.f32 %v1920, %v1968
      %v1970 = vpop.f32.mrf.mxu0
      %v1971 = vadd.f32 %v1922, %v1970
      %1972 = vmatmul.bf16.gmra.mxu0 %v785
      %v1973 = vpop.f32.mrf.mxu0
      %v1974 = vadd.f32 %v1925, %v1973
      %v1975 = vpop.f32.mrf.mxu0
      %v1976 = vadd.f32 %v1927, %v1975
      %1977 = vmatmul.bf16.gmra.mxu0 %v786
      %v1978 = vpop.f32.mrf.mxu0
      %v1979 = vadd.f32 %v1930, %v1978
      %v1980 = vpop.f32.mrf.mxu0
      %v1981 = vadd.f32 %v1932, %v1980
      %1982 = vmatmul.bf16.gmra.mxu0 %v787
      %v1983 = vpop.f32.mrf.mxu0
      %v1984 = vadd.f32 %v1935, %v1983
      %v1985 = vpop.f32.mrf.mxu0
      %v1986 = vadd.f32 %v1937, %v1985
      %1987 = vdwg.mxu0
      %1988 = vmatpush.bf16.msra.mxu0 %v1687
      %1989 = vmatpush.bf16.msra.mxu0 %v1686
      %1990 = vmatpush.bf16.msra.mxu0 %v1685
      %1991 = vmatpush.bf16.msra.mxu0 %v1684
      %1992 = vmatpush.bf16.msra.mxu0 %v1683
      %1993 = vmatpush.bf16.msra.mxu0 %v1682
      %1994 = vmatpush.bf16.msra.mxu0 %v1681
      %1995 = vmatpush.bf16.msra.mxu0 %v1680
      %1996 = vmatmul.bf16.gmra.mxu0 %v831
      %v1997 = vpop.f32.mrf.mxu0
      %v1998 = vadd.f32 %v1949, %v1997
      %v1999 = vpop.f32.mrf.mxu0
      %v2000 = vadd.f32 %v1951, %v1999
      %2001 = vmatmul.bf16.gmra.mxu0 %v843
      %v2002 = vpop.f32.mrf.mxu0
      %v2003 = vadd.f32 %v1954, %v2002
      %v2004 = vpop.f32.mrf.mxu0
      %v2005 = vadd.f32 %v1956, %v2004
      %2006 = vmatmul.bf16.gmra.mxu0 %v855
      %v2007 = vpop.f32.mrf.mxu0
      %v2008 = vadd.f32 %v1959, %v2007
      %v2009 = vpop.f32.mrf.mxu0
      %v2010 = vadd.f32 %v1961, %v2009
      %2011 = vmatmul.bf16.gmra.mxu0 %v867
      %v2012 = vpop.f32.mrf.mxu0
      %v2013 = vadd.f32 %v1964, %v2012
      %v2014 = vpop.f32.mrf.mxu0
      %v2015 = vadd.f32 %v1966, %v2014
      %2016 = vmatmul.bf16.gmra.mxu0 %v879
      %v2017 = vpop.f32.mrf.mxu0
      %v2018 = vadd.f32 %v1969, %v2017
      %v2019 = vpop.f32.mrf.mxu0
      %v2020 = vadd.f32 %v1971, %v2019
      %2021 = vmatmul.bf16.gmra.mxu0 %v891
      %v2022 = vpop.f32.mrf.mxu0
      %v2023 = vadd.f32 %v1974, %v2022
      %v2024 = vpop.f32.mrf.mxu0
      %v2025 = vadd.f32 %v1976, %v2024
      %2026 = vmatmul.bf16.gmra.mxu0 %v903
      %v2027 = vpop.f32.mrf.mxu0
      %v2028 = vadd.f32 %v1979, %v2027
      %v2029 = vpop.f32.mrf.mxu0
      %v2030 = vadd.f32 %v1981, %v2029
      %2031 = vmatmul.bf16.gmra.mxu0 %v915
      %v2032 = vpop.f32.mrf.mxu0
      %v2033 = vadd.f32 %v1984, %v2032
      %v2034 = vpop.f32.mrf.mxu0
      %v2035 = vadd.f32 %v1986, %v2034
      %2036 = vdwg.mxu0
      %2037 = vmatpush.bf16.msra.mxu0 %v1695
      %2038 = vmatpush.bf16.msra.mxu0 %v1694
      %2039 = vmatpush.bf16.msra.mxu0 %v1693
      %2040 = vmatpush.bf16.msra.mxu0 %v1692
      %2041 = vmatpush.bf16.msra.mxu0 %v1691
      %2042 = vmatpush.bf16.msra.mxu0 %v1690
      %2043 = vmatpush.bf16.msra.mxu0 %v1689
      %2044 = vmatpush.bf16.msra.mxu0 %v1688
      %2045 = vmatmul.bf16.gmra.mxu0 %v950
      %v2046 = vpop.f32.mrf.mxu0
      %v2047 = vadd.f32 %v1998, %v2046
      %v2048 = vpop.f32.mrf.mxu0
      %v2049 = vadd.f32 %v2000, %v2048
      %2050 = vmatmul.bf16.gmra.mxu0 %v953
      %v2051 = vpop.f32.mrf.mxu0
      %v2052 = vadd.f32 %v2003, %v2051
      %v2053 = vpop.f32.mrf.mxu0
      %v2054 = vadd.f32 %v2005, %v2053
      %2055 = vmatmul.bf16.gmra.mxu0 %v956
      %v2056 = vpop.f32.mrf.mxu0
      %v2057 = vadd.f32 %v2008, %v2056
      %v2058 = vpop.f32.mrf.mxu0
      %v2059 = vadd.f32 %v2010, %v2058
      %2060 = vmatmul.bf16.gmra.mxu0 %v959
      %v2061 = vpop.f32.mrf.mxu0
      %v2062 = vadd.f32 %v2013, %v2061
      %v2063 = vpop.f32.mrf.mxu0
      %v2064 = vadd.f32 %v2015, %v2063
      %2065 = vmatmul.bf16.gmra.mxu0 %v962
      %v2066 = vpop.f32.mrf.mxu0
      %v2067 = vadd.f32 %v2018, %v2066
      %v2068 = vpop.f32.mrf.mxu0
      %v2069 = vadd.f32 %v2020, %v2068
      %2070 = vmatmul.bf16.gmra.mxu0 %v965
      %v2071 = vpop.f32.mrf.mxu0
      %v2072 = vadd.f32 %v2023, %v2071
      %v2073 = vpop.f32.mrf.mxu0
      %v2074 = vadd.f32 %v2025, %v2073
      %2075 = vmatmul.bf16.gmra.mxu0 %v968
      %v2076 = vpop.f32.mrf.mxu0
      %v2077 = vadd.f32 %v2028, %v2076
      %v2078 = vpop.f32.mrf.mxu0
      %v2079 = vadd.f32 %v2030, %v2078
      %2080 = vmatmul.bf16.gmra.mxu0 %v971
      %v2081 = vpop.f32.mrf.mxu0
      %v2082 = vadd.f32 %v2033, %v2081
      %v2083 = vpop.f32.mrf.mxu0
      %v2084 = vadd.f32 %v2035, %v2083
      %2085 = vdwg.mxu0
      %2086 = vmatpush.bf16.msra.mxu0 %v1703
      %2087 = vmatpush.bf16.msra.mxu0 %v1702
      %2088 = vmatpush.bf16.msra.mxu0 %v1701
      %2089 = vmatpush.bf16.msra.mxu0 %v1700
      %2090 = vmatpush.bf16.msra.mxu0 %v1699
      %2091 = vmatpush.bf16.msra.mxu0 %v1698
      %2092 = vmatpush.bf16.msra.mxu0 %v1697
      %2093 = vmatpush.bf16.msra.mxu0 %v1696
      %2094 = vmatmul.bf16.gmra.mxu0 %v1012
      %v2095 = vpop.f32.mrf.mxu0
      %v2096 = vadd.f32 %v2047, %v2095
      %v2097 = vpop.f32.mrf.mxu0
      %v2098 = vadd.f32 %v2049, %v2097
      %2099 = vmatmul.bf16.gmra.mxu0 %v1013
      %v2100 = vpop.f32.mrf.mxu0
      %v2101 = vadd.f32 %v2052, %v2100
      %v2102 = vpop.f32.mrf.mxu0
      %v2103 = vadd.f32 %v2054, %v2102
      %2104 = vmatmul.bf16.gmra.mxu0 %v1014
      %v2105 = vpop.f32.mrf.mxu0
      %v2106 = vadd.f32 %v2057, %v2105
      %v2107 = vpop.f32.mrf.mxu0
      %v2108 = vadd.f32 %v2059, %v2107
      %2109 = vmatmul.bf16.gmra.mxu0 %v1015
      %v2110 = vpop.f32.mrf.mxu0
      %v2111 = vadd.f32 %v2062, %v2110
      %v2112 = vpop.f32.mrf.mxu0
      %v2113 = vadd.f32 %v2064, %v2112
      %2114 = vmatmul.bf16.gmra.mxu0 %v1016
      %v2115 = vpop.f32.mrf.mxu0
      %v2116 = vadd.f32 %v2067, %v2115
      %v2117 = vpop.f32.mrf.mxu0
      %v2118 = vadd.f32 %v2069, %v2117
      %2119 = vmatmul.bf16.gmra.mxu0 %v1017
      %v2120 = vpop.f32.mrf.mxu0
      %v2121 = vadd.f32 %v2072, %v2120
      %v2122 = vpop.f32.mrf.mxu0
      %v2123 = vadd.f32 %v2074, %v2122
      %2124 = vmatmul.bf16.gmra.mxu0 %v1018
      %v2125 = vpop.f32.mrf.mxu0
      %v2126 = vadd.f32 %v2077, %v2125
      %v2127 = vpop.f32.mrf.mxu0
      %v2128 = vadd.f32 %v2079, %v2127
      %2129 = vmatmul.bf16.gmra.mxu0 %v1019
      %v2130 = vpop.f32.mrf.mxu0
      %v2131 = vadd.f32 %v2082, %v2130
      %v2132 = vpop.f32.mrf.mxu0
      %v2133 = vadd.f32 %v2084, %v2132
      %2134 = vdwg.mxu0
      %2135 = vmatpush.bf16.msra.mxu0 %v1711
      %2136 = vmatpush.bf16.msra.mxu0 %v1710
      %2137 = vmatpush.bf16.msra.mxu0 %v1709
      %2138 = vmatpush.bf16.msra.mxu0 %v1708
      %2139 = vmatpush.bf16.msra.mxu0 %v1707
      %2140 = vmatpush.bf16.msra.mxu0 %v1706
      %2141 = vmatpush.bf16.msra.mxu0 %v1705
      %2142 = vmatpush.bf16.msra.mxu0 %v1704
      %2143 = vmatmul.bf16.gmra.mxu0 %v1063
      %v2144 = vpop.f32.mrf.mxu0
      %v2145 = vadd.f32 %v2096, %v2144
      %v2146 = vpop.f32.mrf.mxu0
      %v2147 = vadd.f32 %v2098, %v2146
      %2148 = vmatmul.bf16.gmra.mxu0 %v1075
      %v2149 = vpop.f32.mrf.mxu0
      %v2150 = vadd.f32 %v2101, %v2149
      %v2151 = vpop.f32.mrf.mxu0
      %v2152 = vadd.f32 %v2103, %v2151
      %2153 = vmatmul.bf16.gmra.mxu0 %v1087
      %v2154 = vpop.f32.mrf.mxu0
      %v2155 = vadd.f32 %v2106, %v2154
      %v2156 = vpop.f32.mrf.mxu0
      %v2157 = vadd.f32 %v2108, %v2156
      %2158 = vmatmul.bf16.gmra.mxu0 %v1099
      %v2159 = vpop.f32.mrf.mxu0
      %v2160 = vadd.f32 %v2111, %v2159
      %v2161 = vpop.f32.mrf.mxu0
      %v2162 = vadd.f32 %v2113, %v2161
      %2163 = vmatmul.bf16.gmra.mxu0 %v1111
      %v2164 = vpop.f32.mrf.mxu0
      %v2165 = vadd.f32 %v2116, %v2164
      %v2166 = vpop.f32.mrf.mxu0
      %v2167 = vadd.f32 %v2118, %v2166
      %2168 = vmatmul.bf16.gmra.mxu0 %v1123
      %v2169 = vpop.f32.mrf.mxu0
      %v2170 = vadd.f32 %v2121, %v2169
      %v2171 = vpop.f32.mrf.mxu0
      %v2172 = vadd.f32 %v2123, %v2171
      %2173 = vmatmul.bf16.gmra.mxu0 %v1135
      %v2174 = vpop.f32.mrf.mxu0
      %v2175 = vadd.f32 %v2126, %v2174
      %v2176 = vpop.f32.mrf.mxu0
      %v2177 = vadd.f32 %v2128, %v2176
      %2178 = vmatmul.bf16.gmra.mxu0 %v1147
      %v2179 = vpop.f32.mrf.mxu0
      %v2180 = vadd.f32 %v2131, %v2179
      %v2181 = vpop.f32.mrf.mxu0
      %v2182 = vadd.f32 %v2133, %v2181
      %2183 = vdwg.mxu0
      %2184 = vmatpush.bf16.msra.mxu0 %v1719
      %2185 = vmatpush.bf16.msra.mxu0 %v1718
      %2186 = vmatpush.bf16.msra.mxu0 %v1717
      %2187 = vmatpush.bf16.msra.mxu0 %v1716
      %2188 = vmatpush.bf16.msra.mxu0 %v1715
      %2189 = vmatpush.bf16.msra.mxu0 %v1714
      %2190 = vmatpush.bf16.msra.mxu0 %v1713
      %2191 = vmatpush.bf16.msra.mxu0 %v1712
      %2192 = vmatmul.bf16.gmra.mxu0 %v1182
      %v2193 = vpop.f32.mrf.mxu0
      %v2194 = vadd.f32 %v2145, %v2193
      %v2195 = vpop.f32.mrf.mxu0
      %v2196 = vadd.f32 %v2147, %v2195
      %2197 = vmatmul.bf16.gmra.mxu0 %v1185
      %v2198 = vpop.f32.mrf.mxu0
      %v2199 = vadd.f32 %v2150, %v2198
      %v2200 = vpop.f32.mrf.mxu0
      %v2201 = vadd.f32 %v2152, %v2200
      %2202 = vmatmul.bf16.gmra.mxu0 %v1188
      %v2203 = vpop.f32.mrf.mxu0
      %v2204 = vadd.f32 %v2155, %v2203
      %v2205 = vpop.f32.mrf.mxu0
      %v2206 = vadd.f32 %v2157, %v2205
      %2207 = vmatmul.bf16.gmra.mxu0 %v1191
      %v2208 = vpop.f32.mrf.mxu0
      %v2209 = vadd.f32 %v2160, %v2208
      %v2210 = vpop.f32.mrf.mxu0
      %v2211 = vadd.f32 %v2162, %v2210
      %2212 = vmatmul.bf16.gmra.mxu0 %v1194
      %v2213 = vpop.f32.mrf.mxu0
      %v2214 = vadd.f32 %v2165, %v2213
      %v2215 = vpop.f32.mrf.mxu0
      %v2216 = vadd.f32 %v2167, %v2215
      %2217 = vmatmul.bf16.gmra.mxu0 %v1197
      %v2218 = vpop.f32.mrf.mxu0
      %v2219 = vadd.f32 %v2170, %v2218
      %v2220 = vpop.f32.mrf.mxu0
      %v2221 = vadd.f32 %v2172, %v2220
      %2222 = vmatmul.bf16.gmra.mxu0 %v1200
      %v2223 = vpop.f32.mrf.mxu0
      %v2224 = vadd.f32 %v2175, %v2223
      %v2225 = vpop.f32.mrf.mxu0
      %v2226 = vadd.f32 %v2177, %v2225
      %2227 = vmatmul.bf16.gmra.mxu0 %v1203
      %v2228 = vpop.f32.mrf.mxu0
      %v2229 = vadd.f32 %v2180, %v2228
      %v2230 = vpop.f32.mrf.mxu0
      %v2231 = vadd.f32 %v2182, %v2230
      %2232 = vdwg.mxu0
      %v2233 = vpack.c.bf16 %v2194, %v2194
      %v2234 = vpack.c.bf16 %v2196, %v2196
      %v2235 = vpack.c.bf16 %v2199, %v2199
      %v2236 = vpack.c.bf16 %v2201, %v2201
      %v2237 = vpack.c.bf16 %v2204, %v2204
      %v2238 = vpack.c.bf16 %v2206, %v2206
      %v2239 = vpack.c.bf16 %v2209, %v2209
      %v2240 = vpack.c.bf16 %v2211, %v2211
      %v2241 = vpack.c.bf16 %v2214, %v2214
      %v2242 = vpack.c.bf16 %v2216, %v2216
      %v2243 = vpack.c.bf16 %v2219, %v2219
      %v2244 = vpack.c.bf16 %v2221, %v2221
      %v2245 = vpack.c.bf16 %v2224, %v2224
      %v2246 = vpack.c.bf16 %v2226, %v2226
      %v2247 = vpack.c.bf16 %v2229, %v2229
      %v2248 = vpack.c.bf16 %v2231, %v2231
      %2249 = vst [vmem:[%s318] sm:$0xf] %v2233
      %2250 = vst [vmem:[%s318 + $0x4] sm:$0xf] %v2234
      %2251 = vst [vmem:[%s318 + $0x8] sm:$0xf] %v2235
      %2252 = vst [vmem:[%s318 + $0xc] sm:$0xf] %v2236
      %2253 = vst [vmem:[%s318 + $0x10] sm:$0xf] %v2237
      %2254 = vst [vmem:[%s318 + $0x14] sm:$0xf] %v2238
      %2255 = vst [vmem:[%s318 + $0x18] sm:$0xf] %v2239
      %2256 = vst [vmem:[%s318 + $0x1c] sm:$0xf] %v2240
      %2257 = vst [vmem:[%s318 + $0x20] sm:$0xf] %v2241
      %2258 = vst [vmem:[%s318 + $0x24] sm:$0xf] %v2242
      %2259 = vst [vmem:[%s318 + $0x28] sm:$0xf] %v2243
      %2260 = vst [vmem:[%s318 + $0x2c] sm:$0xf] %v2244
      %2261 = vst [vmem:[%s318 + $0x30] sm:$0xf] %v2245
      %2262 = vst [vmem:[%s318 + $0x34] sm:$0xf] %v2246
      %2263 = vst [vmem:[%s318 + $0x38] sm:$0xf] %v2247
      %2264 = vst [vmem:[%s318 + $0x3c] sm:$0xf] %v2248
      %s2265 = smul.u32 8, %s20
      %p2266 = scmp.lt.s32.totalorder %s19, 1
      %s2267 = scalar_select %p2266, %s19, 1
      %p2268 = scmp.lt.s32.totalorder %s2265, 15
      %s2269 = scalar_select %p2268, %s2265, 15
      %s2270 = smul.addr %s2269, 2
      %s2271 = smul.addr %s2267, 32
      %s2272 = sadd.s32 %s2270, %s2271
      %s2273 = smul.addr %s2272, 4
      %s2274 = scalar_lea.vmem %s4, %s2273
      // Predicated region
      $region37: #{conv_forward.1} parent=35 // pred_check
        %p2275 = pneg %p149
      $region38: #{conv_forward.1} parent=35 // pred_check_branch
        %2277 = sbr.rel (%p2275) target = $region40
      $region39: #{conv_forward.1} parent=35 // pred_region
        %s2278 = smul.u32 8, %s20
      $region40: #{conv_forward.1} parent=35 // pred_fallthru
        _
    $region36: #{conv_forward.1} parent=5 // pred_fallthru
      _
    %p2279 = scmp.le.s32.totalorder 2, %s10
    // Predicated region
    $region41: #{conv_forward.1} parent=5 // pred_check
      %p2280 = pneg %p2279
    $region42: #{conv_forward.1} parent=5 // pred_check_branch
      %2282 = sbr.rel (%p2280) target = $region44
    $region43: #{conv_forward.1} parent=5 // pred_region
      %s2283 = ssub.s32 %s10, 2
      // Predicated region
      $region45: #{conv_forward.1} parent=43 // pred_check
        %p2284 = pneg %p155
      $region46: #{conv_forward.1} parent=43 // pred_check_branch
        %2286 = sbr.rel (%p2284) target = $region48
      $region47: #{conv_forward.1} parent=43 // pred_region
        %s2287 = smul.u32 8, %s22
        %p2288 = scmp.lt.s32.totalorder %s21, 1
        %s2289 = scalar_select %p2288, %s21, 1
        %p2290 = scmp.lt.s32.totalorder %s2287, 15
        %s2291 = scalar_select %p2290, %s2287, 15
        %s2292 = smul.addr %s2291, 2
        %s2293 = smul.addr %s2289, 32
        %s2294 = sadd.s32 %s2292, %s2293
        %s2295 = smul.addr %s2294, 4
        %s2296 = scalar_lea.vmem %s4, %s2295
      $region48: #{conv_forward.1} parent=43 // pred_fallthru
        _
    $region44: #{conv_forward.1} parent=5 // pred_fallthru
      _
  $region6: #{conv_forward.1} parent=0 // loop_footer
    %s14 = sadd.s32 1, %s10
  $region7: #{conv_forward.1} parent=0 // loop_footer_branch
    %9 = sbr.rel target = $region3
  $region8: #{conv_forward.1} parent=0 // loop_exit
    _

</llo_original>
